<compile_context>
chip_gen: v7x
topology: tpu7x:2x2x1
jax: 0.10.0
libtpu: 0.0.40
codegen_flags: <defaults>
</compile_context>

<pallas_src>
import jax
import jax.numpy as jnp
from jax.experimental import pallas as pl
from jax.experimental.pallas import tpu as pltpu

LN_EPS = 1e-5


def _hardswish(x):
    return x * jnp.clip(x + 3.0, 0.0, 6.0) * (1.0 / 6.0)


def _hardswish_unscaled(x):
    # hardswish without the 1/6 — the scale is folded into the downstream weights.
    return x * jnp.clip(x + 3.0, 0.0, 6.0)


def _row_layernorm(x, gamma, beta):
    # x: (TB, S*F). LayerNorm over the joint (S,F) block == over the lane axis.
    mean = jnp.mean(x, axis=-1, keepdims=True)
    centered = x - mean
    var = jnp.mean(centered * centered, axis=-1, keepdims=True)
    return centered * jax.lax.rsqrt(var + LN_EPS) * gamma + beta


def _itm_kernel(x_ref, g1_ref, b1_ref, w1_ref, w2_ref, g2_ref, b2_ref,
                m1_ref, m2fc_ref, wfc_ref, bfc_ref, o_ref):
    wdt = w1_ref.dtype                                   # bf16 (fast) or f32 (exact)
    x = x_ref[...]                                       # (TB, SF) f32

    # ---- IndicatorMixing ----
    h = _row_layernorm(x, g1_ref[...], b1_ref[...])
    h = jnp.dot(h.astype(wdt), w1_ref[...], preferred_element_type=jnp.float32)  # (TB, SH)
    h = _hardswish_unscaled(h)                           # 1/6 folded into W2
    h = jnp.dot(h.astype(wdt), w2_ref[...], preferred_element_type=jnp.float32)  # (TB, SF)
    x1 = x + h

    # ---- TimeMixing (first mix) with fc folded into the second mix ----
    h2 = _row_layernorm(x1, g2_ref[...], b2_ref[...])
    u = jnp.dot(h2.astype(wdt), m1_ref[...], preferred_element_type=jnp.float32)  # (TB, SF)
    u = _hardswish_unscaled(u)                           # 1/6 folded into m2fc

    # out = x1 @ Wfc_exp + u @ (M2 @ Wfc_exp)/6 + b   (lane-padded to OUT columns)
    out = jnp.dot(x1.astype(wdt), wfc_ref[...], preferred_element_type=jnp.float32)
    out = out + jnp.dot(u.astype(wdt), m2fc_ref[...], preferred_element_type=jnp.float32)
    o_ref[...] = out + bfc_ref[0, 0]


def indicator_time_mixing(x, gamma1, beta1, w1, w2, gamma2, beta2,
                          l1, l2, w_fc, b_fc, *, block_b=1024, use_bf16=True):
    """IndicatorTimeMixing forward.

    x: (B, S, F) f32; gamma*/beta*: (S, F); w1: (F, H); w2: (H, F);
    l1/l2: lower-triangular (S, S) time-mixing matrices; w_fc: (F,); b_fc: ().
    Returns (B, S) f32.
    """
    B, S, F = x.shape
    H = w1.shape[1]
    SF, SH = S * F, S * H
    OUT = max(128, pl.cdiv(S, 128) * 128)        # lane-dense output width
    f32 = jnp.float32

    # --- lane-dense reshapes + one-time weight expansion (plain XLA, cheap) ---
    x2 = x.reshape(B, SF).astype(f32)
    g1 = gamma1.reshape(1, SF).astype(f32)
    b1 = beta1.reshape(1, SF).astype(f32)
    g2 = gamma2.reshape(1, SF).astype(f32)
    b2 = beta2.reshape(1, SF).astype(f32)

    eye_s = jnp.eye(S, dtype=f32)
    w1b = jnp.kron(eye_s, w1.astype(f32))                         # (SF, SH)  per-s F->H
    w2b = jnp.kron(eye_s, w2.astype(f32)) * (1.0 / 6.0)           # (SH, SF)  hardswish/6 folded
    m1 = jnp.kron(l1.astype(f32).T, jnp.eye(F, dtype=f32))        # (SF, SF)  time mixing 1
    wfc_col = w_fc.astype(f32).reshape(F, 1)
    wfc_e = jnp.kron(eye_s, wfc_col)                              # (SF, S)   fc on x1
    m2fc = jnp.kron(l2.astype(f32).T, wfc_col) * (1.0 / 6.0)      # (SF, S)   fc folded into M2
    # Zero-pad projection columns S -> OUT so the kernel's stores are 128-lane dense.
    wfc_e = jnp.pad(wfc_e, ((0, 0), (0, OUT - S)))
    m2fc = jnp.pad(m2fc, ((0, 0), (0, OUT - S)))

    wdt = jnp.bfloat16 if use_bf16 else f32
    w1b, w2b, m1, m2fc, wfc_e = [a.astype(wdt) for a in (w1b, w2b, m1, m2fc, wfc_e)]
    bfc = jnp.asarray(b_fc, f32).reshape(1, 1)

    # --- batch tiling: minimal zero-row padding; grid >= 2 when possible so the
    #     "parallel" axis actually shards across v7x's two TensorCores. ---
    nblk = int(pl.cdiv(B, block_b))
    if B >= 16:
        nblk = max(nblk, 2)
    rows = -(-B // nblk)                 # ceil(B / nblk)
    TB = -(-rows // 8) * 8               # round up to sublane multiple of 8
    Bp = nblk * TB
    if Bp != B:
        x2 = jnp.pad(x2, ((0, Bp - B), (0, 0)))

    const = lambda i: (0, 0)             # grid-invariant operands (DMA'd once)
    wbytes = 2 if use_bf16 else 4
    cost = pl.CostEstimate(
        flops=int(2 * Bp * (2 * SF * SH + SF * SF + 2 * SF * OUT)),
        transcendentals=0,
        bytes_accessed=int(4 * Bp * (SF + OUT)
                           + wbytes * (2 * SF * SH + SF * SF + 2 * SF * OUT)
                           + 4 * (4 * SF + 1)),
    )

    out = pl.pallas_call(
        _itm_kernel,
        out_shape=jax.ShapeDtypeStruct((Bp, OUT), f32),
        grid=(nblk,),
        in_specs=[
            pl.BlockSpec((TB, SF), lambda i: (i, 0)),            # x batch tile
            pl.BlockSpec((1, SF), const),                        # gamma1
            pl.BlockSpec((1, SF), const),                        # beta1
            pl.BlockSpec((SF, SH), const),                       # W1 (block-diag)
            pl.BlockSpec((SH, SF), const),                       # W2/6 (block-diag)
            pl.BlockSpec((1, SF), const),                        # gamma2
            pl.BlockSpec((1, SF), const),                        # beta2
            pl.BlockSpec((SF, SF), const),                       # time-mix M1
            pl.BlockSpec((SF, OUT), const),                      # (M2 @ Wfc)/6, lane-padded
            pl.BlockSpec((SF, OUT), const),                      # Wfc expanded, lane-padded
            pl.BlockSpec(memory_space=pltpu.MemorySpace.SMEM),   # fc bias scalar
        ],
        out_specs=pl.BlockSpec((TB, OUT), lambda i: (i, 0)),
        compiler_params=pltpu.CompilerParams(
            dimension_semantics=("parallel",),
            vmem_limit_bytes=48 * 1024 * 1024,
        ),
        cost_estimate=cost,
    )(x2, g1, b1, w1b, w2b, g2, b2, m1, m2fc, wfc_e, bfc)
    return out[:B, :S]


def indicator_time_mixing_ref(x, gamma1, beta1, w1, w2, gamma2, beta2,
                              l1, l2, w_fc, b_fc):
    """Pure-JAX reference matching the PyTorch module semantics (full f32)."""
    hp = jax.lax.Precision.HIGHEST

    def ln(y, g, b):
        m = jnp.mean(y, axis=(-2, -1), keepdims=True)
        v = jnp.mean((y - m) ** 2, axis=(-2, -1), keepdims=True)
        return (y - m) * jax.lax.rsqrt(v + LN_EPS) * g + b

    h = ln(x, gamma1, beta1)
    h = _hardswish(jnp.einsum('bsf,fh->bsh', h, w1, precision=hp))
    h = jnp.einsum('bsh,hf->bsf', h, w2, precision=hp)
    x1 = x + h
    h2 = ln(x1, gamma2, beta2)
    u = _hardswish(jnp.einsum('ij,bjf->bif', l1, h2, precision=hp))
    v = jnp.einsum('ij,bjf->bif', l2, u, precision=hp)
    x2 = x1 + v
    return jnp.einsum('bsf,f->bs', x2, w_fc, precision=hp) + b_fc


if __name__ == "__main__":
    # Small shapes consistent with the module: feature_dim=32, seq_len=8,
    # hidden_dim=64, batch=2.
    B, S, F, H = 2, 8, 32, 64

    key = jax.random.PRNGKey(0)
    kx, k1, k2, k3, k4, k5, k6 = jax.random.split(key, 7)

    x = jax.random.normal(kx, (B, S, F), dtype=jnp.float32)

    gamma1 = jnp.ones((S, F), jnp.float32)
    beta1 = jnp.zeros((S, F), jnp.float32)
    w1 = jax.random.normal(k1, (F, H), dtype=jnp.float32)
    w2 = jax.random.normal(k2, (H, F), dtype=jnp.float32)

    gamma2 = jnp.ones((S, F), jnp.float32)
    beta2 = jnp.zeros((S, F), jnp.float32)
    l1 = jnp.tril(jax.random.normal(k3, (S, S), dtype=jnp.float32) * 0.01)
    l2 = jnp.tril(jax.random.normal(k4, (S, S), dtype=jnp.float32) * 0.01)

    bound = 1.0 / (F ** 0.5)
    w_fc = jax.random.uniform(k5, (F,), jnp.float32, -bound, bound)
    b_fc = jax.random.uniform(k6, (), jnp.float32, -bound, bound)

    args = (x, gamma1, beta1, w1, w2, gamma2, beta2, l1, l2, w_fc, b_fc)
    ref = indicator_time_mixing_ref(*args)
    scale = float(jnp.max(jnp.abs(ref)))

    # Exact-arithmetic path (f32 matmuls): validates the Kronecker expansion,
    # the fc-folding and the hardswish-1/6 folding.
    out_f32 = jax.block_until_ready(indicator_time_mixing(*args, use_bf16=False))
    assert out_f32.shape == (B, S)
    err_f32 = float(jnp.max(jnp.abs(out_f32 - ref)))
    assert err_f32 <= 2e-3 * scale + 1e-3, f"f32 mismatch: {err_f32} (scale {scale})"

    # Default fast path: bf16 MXU operands with f32 accumulation.
    out = jax.block_until_ready(indicator_time_mixing(*args))
    assert out.shape == (B, S)
    err = float(jnp.max(jnp.abs(out - ref)))
    assert err <= 3e-2 * scale + 1e-2, f"bf16 mismatch: {err} (scale {scale})"

    print("KERNEL_OK")
</pallas_src>

<mosaic_0001>
module attributes {stable_mosaic.version = 11 : i64} {
  func.func @_itm_kernel(%arg0: i32, %arg1: memref<8x256xf32, #tpu.memory_space<vmem>>, %arg2: memref<1x256xf32, #tpu.memory_space<vmem>>, %arg3: memref<1x256xf32, #tpu.memory_space<vmem>>, %arg4: memref<256x512xf32, #tpu.memory_space<vmem>>, %arg5: memref<512x256xf32, #tpu.memory_space<vmem>>, %arg6: memref<1x256xf32, #tpu.memory_space<vmem>>, %arg7: memref<1x256xf32, #tpu.memory_space<vmem>>, %arg8: memref<256x256xf32, #tpu.memory_space<vmem>>, %arg9: memref<256x128xf32, #tpu.memory_space<vmem>>, %arg10: memref<256x128xf32, #tpu.memory_space<vmem>>, %arg11: memref<1x1xf32, #tpu.memory_space<smem>>, %arg12: memref<8x128xf32, #tpu.memory_space<vmem>>) attributes {dimension_semantics = [#tpu.dimension_semantics<parallel>], iteration_bounds = array<i64: 1>, scalar_prefetch = 0 : i64, scratch_operands = 0 : i64, tpu.core_type = #tpu.core_type<tc>, window_params = [{transform_indices = @transform_0, window_bounds = array<i64: 8, 256>}, {pipeline_mode = #tpu.pipeline_mode<synchronous>, transform_indices = @transform_1, window_bounds = array<i64: 1, 256>}, {pipeline_mode = #tpu.pipeline_mode<synchronous>, transform_indices = @transform_2, window_bounds = array<i64: 1, 256>}, {pipeline_mode = #tpu.pipeline_mode<synchronous>, transform_indices = @transform_3, window_bounds = array<i64: 256, 512>}, {pipeline_mode = #tpu.pipeline_mode<synchronous>, transform_indices = @transform_4, window_bounds = array<i64: 512, 256>}, {pipeline_mode = #tpu.pipeline_mode<synchronous>, transform_indices = @transform_5, window_bounds = array<i64: 1, 256>}, {pipeline_mode = #tpu.pipeline_mode<synchronous>, transform_indices = @transform_6, window_bounds = array<i64: 1, 256>}, {pipeline_mode = #tpu.pipeline_mode<synchronous>, transform_indices = @transform_7, window_bounds = array<i64: 256, 256>}, {pipeline_mode = #tpu.pipeline_mode<synchronous>, transform_indices = @transform_8, window_bounds = array<i64: 256, 128>}, {pipeline_mode = #tpu.pipeline_mode<synchronous>, transform_indices = @transform_9, window_bounds = array<i64: 256, 128>}, {transform_indices = @transform_10, window_bounds = array<i64: 1, 1>}, {transform_indices = @transform_11, window_bounds = array<i64: 8, 128>}]} {
    %c0 = arith.constant 0 : index
    %c0_0 = arith.constant 0 : index
    %0 = vector.load %arg1[%c0, %c0_0] : memref<8x256xf32, #tpu.memory_space<vmem>>, vector<8x256xf32>
    %c0_1 = arith.constant 0 : index
    %c0_2 = arith.constant 0 : index
    %1 = vector.load %arg2[%c0_1, %c0_2] : memref<1x256xf32, #tpu.memory_space<vmem>>, vector<1x256xf32>
    %c0_3 = arith.constant 0 : index
    %c0_4 = arith.constant 0 : index
    %2 = vector.load %arg3[%c0_3, %c0_4] : memref<1x256xf32, #tpu.memory_space<vmem>>, vector<1x256xf32>
    %cst = arith.constant dense<0.000000e+00> : vector<8xf32>
    %3 = vector.multi_reduction <add>, %0, %cst [1] : vector<8x256xf32> to vector<8xf32>
    %4 = vector.shape_cast %3 : vector<8xf32> to vector<8x1xf32>
    %cst_5 = arith.constant 2.560000e+02 : f32
    %5 = vector.broadcast %cst_5 : f32 to vector<8x1xf32>
    %6 = arith.divf %4, %5 : vector<8x1xf32>
    %7 = vector.broadcast %6 : vector<8x1xf32> to vector<8x256xf32>
    %8 = arith.subf %0, %7 : vector<8x256xf32>
    %9 = arith.mulf %8, %8 : vector<8x256xf32>
    %cst_6 = arith.constant dense<0.000000e+00> : vector<8xf32>
    %10 = vector.multi_reduction <add>, %9, %cst_6 [1] : vector<8x256xf32> to vector<8xf32>
    %11 = vector.shape_cast %10 : vector<8xf32> to vector<8x1xf32>
    %cst_7 = arith.constant 2.560000e+02 : f32
    %12 = vector.broadcast %cst_7 : f32 to vector<8x1xf32>
    %13 = arith.divf %11, %12 : vector<8x1xf32>
    %cst_8 = arith.constant 9.99999974E-6 : f32
    %14 = vector.broadcast %cst_8 : f32 to vector<8x1xf32>
    %15 = arith.addf %13, %14 : vector<8x1xf32>
    %16 = math.rsqrt %15 : vector<8x1xf32>
    %17 = vector.broadcast %16 : vector<8x1xf32> to vector<8x256xf32>
    %18 = arith.mulf %8, %17 : vector<8x256xf32>
    %19 = vector.broadcast %1 : vector<1x256xf32> to vector<8x256xf32>
    %20 = arith.mulf %18, %19 : vector<8x256xf32>
    %21 = vector.broadcast %2 : vector<1x256xf32> to vector<8x256xf32>
    %22 = arith.addf %20, %21 : vector<8x256xf32>
    %c0_9 = arith.constant 0 : index
    %c0_10 = arith.constant 0 : index
    %23 = vector.load %arg4[%c0_9, %c0_10] : memref<256x512xf32, #tpu.memory_space<vmem>>, vector<256x512xf32>
    %cst_11 = arith.constant dense<0.000000e+00> : vector<8x512xf32>
    %24 = tpu.matmul %22, %23, %cst_11 {dimension_numbers = #tpu.dot_dimension_numbers<[1], [0], [0], [1], [0, 0, 1, 1], [], []>} : vector<8x256xf32>, vector<256x512xf32>, vector<8x512xf32> -> vector<8x512xf32>
    %cst_12 = arith.constant 3.000000e+00 : f32
    %25 = vector.broadcast %cst_12 : f32 to vector<8x512xf32>
    %26 = arith.addf %24, %25 : vector<8x512xf32>
    %cst_13 = arith.constant 0.000000e+00 : f32
    %cst_14 = arith.constant 6.000000e+00 : f32
    %27 = vector.broadcast %cst_13 : f32 to vector<8x512xf32>
    %28 = arith.maximumf %27, %26 : vector<8x512xf32>
    %29 = vector.broadcast %cst_14 : f32 to vector<8x512xf32>
    %30 = arith.minimumf %29, %28 : vector<8x512xf32>
    %31 = arith.mulf %24, %30 : vector<8x512xf32>
    %c0_15 = arith.constant 0 : index
    %c0_16 = arith.constant 0 : index
    %32 = vector.load %arg5[%c0_15, %c0_16] : memref<512x256xf32, #tpu.memory_space<vmem>>, vector<512x256xf32>
    %cst_17 = arith.constant dense<0.000000e+00> : vector<8x256xf32>
    %33 = tpu.matmul %31, %32, %cst_17 {dimension_numbers = #tpu.dot_dimension_numbers<[1], [0], [0], [1], [0, 0, 1, 1], [], []>} : vector<8x512xf32>, vector<512x256xf32>, vector<8x256xf32> -> vector<8x256xf32>
    %34 = arith.addf %0, %33 : vector<8x256xf32>
    %c0_18 = arith.constant 0 : index
    %c0_19 = arith.constant 0 : index
    %35 = vector.load %arg6[%c0_18, %c0_19] : memref<1x256xf32, #tpu.memory_space<vmem>>, vector<1x256xf32>
    %c0_20 = arith.constant 0 : index
    %c0_21 = arith.constant 0 : index
    %36 = vector.load %arg7[%c0_20, %c0_21] : memref<1x256xf32, #tpu.memory_space<vmem>>, vector<1x256xf32>
    %cst_22 = arith.constant dense<0.000000e+00> : vector<8xf32>
    %37 = vector.multi_reduction <add>, %34, %cst_22 [1] : vector<8x256xf32> to vector<8xf32>
    %38 = vector.shape_cast %37 : vector<8xf32> to vector<8x1xf32>
    %cst_23 = arith.constant 2.560000e+02 : f32
    %39 = vector.broadcast %cst_23 : f32 to vector<8x1xf32>
    %40 = arith.divf %38, %39 : vector<8x1xf32>
    %41 = vector.broadcast %40 : vector<8x1xf32> to vector<8x256xf32>
    %42 = arith.subf %34, %41 : vector<8x256xf32>
    %43 = arith.mulf %42, %42 : vector<8x256xf32>
    %cst_24 = arith.constant dense<0.000000e+00> : vector<8xf32>
    %44 = vector.multi_reduction <add>, %43, %cst_24 [1] : vector<8x256xf32> to vector<8xf32>
    %45 = vector.shape_cast %44 : vector<8xf32> to vector<8x1xf32>
    %cst_25 = arith.constant 2.560000e+02 : f32
    %46 = vector.broadcast %cst_25 : f32 to vector<8x1xf32>
    %47 = arith.divf %45, %46 : vector<8x1xf32>
    %cst_26 = arith.constant 9.99999974E-6 : f32
    %48 = vector.broadcast %cst_26 : f32 to vector<8x1xf32>
    %49 = arith.addf %47, %48 : vector<8x1xf32>
    %50 = math.rsqrt %49 : vector<8x1xf32>
    %51 = vector.broadcast %50 : vector<8x1xf32> to vector<8x256xf32>
    %52 = arith.mulf %42, %51 : vector<8x256xf32>
    %53 = vector.broadcast %35 : vector<1x256xf32> to vector<8x256xf32>
    %54 = arith.mulf %52, %53 : vector<8x256xf32>
    %55 = vector.broadcast %36 : vector<1x256xf32> to vector<8x256xf32>
    %56 = arith.addf %54, %55 : vector<8x256xf32>
    %c0_27 = arith.constant 0 : index
    %c0_28 = arith.constant 0 : index
    %57 = vector.load %arg8[%c0_27, %c0_28] : memref<256x256xf32, #tpu.memory_space<vmem>>, vector<256x256xf32>
    %cst_29 = arith.constant dense<0.000000e+00> : vector<8x256xf32>
    %58 = tpu.matmul %56, %57, %cst_29 {dimension_numbers = #tpu.dot_dimension_numbers<[1], [0], [0], [1], [0, 0, 1, 1], [], []>} : vector<8x256xf32>, vector<256x256xf32>, vector<8x256xf32> -> vector<8x256xf32>
    %cst_30 = arith.constant 3.000000e+00 : f32
    %59 = vector.broadcast %cst_30 : f32 to vector<8x256xf32>
    %60 = arith.addf %58, %59 : vector<8x256xf32>
    %cst_31 = arith.constant 0.000000e+00 : f32
    %cst_32 = arith.constant 6.000000e+00 : f32
    %61 = vector.broadcast %cst_31 : f32 to vector<8x256xf32>
    %62 = arith.maximumf %61, %60 : vector<8x256xf32>
    %63 = vector.broadcast %cst_32 : f32 to vector<8x256xf32>
    %64 = arith.minimumf %63, %62 : vector<8x256xf32>
    %65 = arith.mulf %58, %64 : vector<8x256xf32>
    %c0_33 = arith.constant 0 : index
    %c0_34 = arith.constant 0 : index
    %66 = vector.load %arg10[%c0_33, %c0_34] : memref<256x128xf32, #tpu.memory_space<vmem>>, vector<256x128xf32>
    %cst_35 = arith.constant dense<0.000000e+00> : vector<8x128xf32>
    %67 = tpu.matmul %34, %66, %cst_35 {dimension_numbers = #tpu.dot_dimension_numbers<[1], [0], [0], [1], [0, 0, 1, 1], [], []>} : vector<8x256xf32>, vector<256x128xf32>, vector<8x128xf32> -> vector<8x128xf32>
    %c0_36 = arith.constant 0 : index
    %c0_37 = arith.constant 0 : index
    %68 = vector.load %arg9[%c0_36, %c0_37] : memref<256x128xf32, #tpu.memory_space<vmem>>, vector<256x128xf32>
    %cst_38 = arith.constant dense<0.000000e+00> : vector<8x128xf32>
    %69 = tpu.matmul %65, %68, %cst_38 {dimension_numbers = #tpu.dot_dimension_numbers<[1], [0], [0], [1], [0, 0, 1, 1], [], []>} : vector<8x256xf32>, vector<256x128xf32>, vector<8x128xf32> -> vector<8x128xf32>
    %70 = arith.addf %67, %69 : vector<8x128xf32>
    %c0_39 = arith.constant 0 : index
    %c0_40 = arith.constant 0 : index
    %71 = memref.load %arg11[%c0_39, %c0_40] : memref<1x1xf32, #tpu.memory_space<smem>>
    %72 = vector.broadcast %71 : f32 to vector<8x128xf32>
    %73 = arith.addf %70, %72 : vector<8x128xf32>
    %c0_41 = arith.constant 0 : index
    %c0_42 = arith.constant 0 : index
    %74 = vector.load %arg12[%c0_41, %c0_42] : memref<8x128xf32, #tpu.memory_space<vmem>>, vector<8x128xf32>
    tpu.vector_store %arg12[%c0_41, %c0_42], %73 {strides = array<i32>} : memref<8x128xf32, #tpu.memory_space<vmem>>, vector<8x128xf32>,
    return
  }
  func.func @transform_0(%arg0: i32) -> (i32, i32) {
    %c0_i32 = arith.constant 0 : i32
    %c0_i32_0 = arith.constant 0 : i32
    return %arg0, %c0_i32 : i32, i32
  }
  func.func @transform_1(%arg0: i32) -> (i32, i32) {
    %c0_i32 = arith.constant 0 : i32
    %c0_i32_0 = arith.constant 0 : i32
    %c0_i32_1 = arith.constant 0 : i32
    return %c0_i32, %c0_i32_0 : i32, i32
  }
  func.func @transform_2(%arg0: i32) -> (i32, i32) {
    %c0_i32 = arith.constant 0 : i32
    %c0_i32_0 = arith.constant 0 : i32
    %c0_i32_1 = arith.constant 0 : i32
    return %c0_i32, %c0_i32_0 : i32, i32
  }
  func.func @transform_3(%arg0: i32) -> (i32, i32) {
    %c0_i32 = arith.constant 0 : i32
    %c0_i32_0 = arith.constant 0 : i32
    %c0_i32_1 = arith.constant 0 : i32
    return %c0_i32, %c0_i32_0 : i32, i32
  }
  func.func @transform_4(%arg0: i32) -> (i32, i32) {
    %c0_i32 = arith.constant 0 : i32
    %c0_i32_0 = arith.constant 0 : i32
    %c0_i32_1 = arith.constant 0 : i32
    return %c0_i32, %c0_i32_0 : i32, i32
  }
  func.func @transform_5(%arg0: i32) -> (i32, i32) {
    %c0_i32 = arith.constant 0 : i32
    %c0_i32_0 = arith.constant 0 : i32
    %c0_i32_1 = arith.constant 0 : i32
    return %c0_i32, %c0_i32_0 : i32, i32
  }
  func.func @transform_6(%arg0: i32) -> (i32, i32) {
    %c0_i32 = arith.constant 0 : i32
    %c0_i32_0 = arith.constant 0 : i32
    %c0_i32_1 = arith.constant 0 : i32
    return %c0_i32, %c0_i32_0 : i32, i32
  }
  func.func @transform_7(%arg0: i32) -> (i32, i32) {
    %c0_i32 = arith.constant 0 : i32
    %c0_i32_0 = arith.constant 0 : i32
    %c0_i32_1 = arith.constant 0 : i32
    return %c0_i32, %c0_i32_0 : i32, i32
  }
  func.func @transform_8(%arg0: i32) -> (i32, i32) {
    %c0_i32 = arith.constant 0 : i32
    %c0_i32_0 = arith.constant 0 : i32
    %c0_i32_1 = arith.constant 0 : i32
    return %c0_i32, %c0_i32_0 : i32, i32
  }
  func.func @transform_9(%arg0: i32) -> (i32, i32) {
    %c0_i32 = arith.constant 0 : i32
    %c0_i32_0 = arith.constant 0 : i32
    %c0_i32_1 = arith.constant 0 : i32
    return %c0_i32, %c0_i32_0 : i32, i32
  }
  func.func @transform_10(%arg0: i32) -> (i32, i32) {
    %c0_i32 = arith.constant 0 : i32
    %c0_i32_0 = arith.constant 0 : i32
    %c0_i32_1 = arith.constant 0 : i32
    return %c0_i32, %c0_i32_0 : i32, i32
  }
  func.func @transform_11(%arg0: i32) -> (i32, i32) {
    %c0_i32 = arith.constant 0 : i32
    %c0_i32_0 = arith.constant 0 : i32
    return %arg0, %c0_i32 : i32, i32
  }
}

</mosaic_0001>

<llo_original>
// kernel: tpu_custom_call.1
$region0: #{tpu_custom_call.1}
  #allocation0 [shape = 'u32[]', space=smem, size = 0x4, offset = 0x4, fixed_abs, tag = 'smem constant byte address 0x4 - core index']
  #allocation1 [shape = 'u32[144,128]{1,0:T(1,128)}', space=vmem, size = 0x12000, scoped, tag = 'internal scratch']
  #allocation2 [shape = 'f32[1,1]{1,0:T(1,128)S(6)}', space=smem, size = 0x200, scoped, tag = 'scoped memory for tpu_custom_call.1']
  %s0 = inlined_call_operand.hbm [shape: f32[8,256], index: 0, kind: input, shape index: {}]
  %s1 = inlined_call_operand.vmem [shape: f32[1,256], index: 1, kind: input, shape index: {}]
  %s2 = inlined_call_operand.vmem [shape: f32[1,256], index: 2, kind: input, shape index: {}]
  %s3 = inlined_call_operand.hbm [shape: f32[256,512], index: 3, kind: input, shape index: {}]
  %s4 = inlined_call_operand.hbm [shape: f32[512,256], index: 4, kind: input, shape index: {}]
  %s5 = inlined_call_operand.vmem [shape: f32[1,256], index: 5, kind: input, shape index: {}]
  %s6 = inlined_call_operand.vmem [shape: f32[1,256], index: 6, kind: input, shape index: {}]
  %s7 = inlined_call_operand.hbm [shape: f32[256,256], index: 7, kind: input, shape index: {}]
  %s8 = inlined_call_operand.hbm [shape: f32[256,128], index: 8, kind: input, shape index: {}]
  %s9 = inlined_call_operand.hbm [shape: f32[256,128], index: 9, kind: input, shape index: {}]
  %s10 = inlined_call_operand.<no memory space> [shape: f32[1,1], index: 10, kind: input, shape index: {}]
  %s11 = inlined_call_operand.hbm [shape: f32[8,128], index: 11, kind: output, shape index: {}]
  %s12 = sld [smem:[#allocation0]]
  $region78: #{tpu_custom_call.1} parent=0
    _
  %s14 = ssub.s32 1, %s12
  %s15 = scalar_select 0, %s14, %s12
  %16 = sst [smem:[#allocation2]] %s10
  $region1: #{tpu_custom_call.1} parent=0
    #allocation3 [shape = 'u8[8192]{0}', space=vmem, size = 0x2000, scoped, tag = 'input window, operand 0, single buffered']
    #allocation4 [shape = 's32[1]{0}', space=sflag, size = 0x4, scoped, tag = 'scoped memory for tpu_custom_call.1']
    #allocation5 [shape = 's32[1]{0}', space=sflag, size = 0x4, scoped, tag = 'scoped memory for tpu_custom_call.1']
    #allocation6 [shape = 'u8[524288]{0}', space=vmem, size = 0x80000, scoped, tag = 'input window, operand 3, single buffered']
    #allocation7 [shape = 's32[1]{0}', space=sflag, size = 0x4, scoped, tag = 'scoped memory for tpu_custom_call.1']
    #allocation8 [shape = 'u8[524288]{0}', space=vmem, size = 0x80000, scoped, tag = 'input window, operand 4, single buffered']
    #allocation9 [shape = 'u8[262144]{0}', space=vmem, size = 0x40000, scoped, tag = 'input window, operand 7, single buffered']
    #allocation10 [shape = 's32[1]{0}', space=sflag, size = 0x4, scoped, tag = 'scoped memory for tpu_custom_call.1']
    #allocation11 [shape = 'u8[131072]{0}', space=vmem, size = 0x20000, scoped, tag = 'input window, operand 8, single buffered']
    #allocation12 [shape = 'u8[131072]{0}', space=vmem, size = 0x20000, scoped, tag = 'input window, operand 9, single buffered']
    #allocation13 [shape = 's32[1]{0}', space=sflag, size = 0x4, scoped, tag = 'scoped memory for tpu_custom_call.1']
    #allocation14 [shape = 'u8[4096]{0}', space=vmem, size = 0x1000, scoped, tag = 'output window, operand 0, single buffered']
    %17 = vsyncpa [#allocation4], 0
    %18 = vsyncpa [#allocation7], 0
    %19 = vsyncpa [#allocation10], 0
    %20 = vsyncpa [#allocation13], 0
    %21 = vsyncpa [#allocation5], 0
    // Predicated region
    $region2: #{tpu_custom_call.1} parent=1 // pred_check
      _
    $region3: #{tpu_custom_call.1} parent=1 // pred_check_branch
      %23 = sbr.rel (0) target = $region5
    $region4: #{tpu_custom_call.1} parent=1 // pred_region
      %s25 = ssub.s32 256, 256
      %26 = vsyncadd [#allocation4], %s25
      %s28 = sshll.u32 [#allocation3], 4
      %s29 = int_to_ptr.vmem [resolvable:$true] %s28
      %31 = dma.hbm_to_vmem [thread:$0]  %s0, 256, %s29, [#allocation4]
    $region5: #{tpu_custom_call.1} parent=1 // pred_fallthru
      _
    // Predicated region
    $region6: #{tpu_custom_call.1} parent=1 // pred_check
      _
    $region7: #{tpu_custom_call.1} parent=1 // pred_check_branch
      %33 = sbr.rel (0) target = $region9
    $region8: #{tpu_custom_call.1} parent=1 // pred_region
      _
    $region9: #{tpu_custom_call.1} parent=1 // pred_fallthru
      _
    // Predicated region
    $region10: #{tpu_custom_call.1} parent=1 // pred_check
      _
    $region11: #{tpu_custom_call.1} parent=1 // pred_check_branch
      %35 = sbr.rel (0) target = $region13
    $region12: #{tpu_custom_call.1} parent=1 // pred_region
      _
    $region13: #{tpu_custom_call.1} parent=1 // pred_fallthru
      _
    // Predicated region
    $region14: #{tpu_custom_call.1} parent=1 // pred_check
      _
    $region15: #{tpu_custom_call.1} parent=1 // pred_check_branch
      %37 = sbr.rel (0) target = $region17
    $region16: #{tpu_custom_call.1} parent=1 // pred_region
      %s39 = ssub.s32 16384, 16384
      %40 = vsyncadd [#allocation7], %s39
      %s41 = sshll.u32 [#allocation6], 4
      %s42 = int_to_ptr.vmem [resolvable:$true] %s41
      %47 = dma.hbm_to_vmem [thread:$0]  %s3, 16384, %s42, [#allocation7], 512, 512, 32
    $region17: #{tpu_custom_call.1} parent=1 // pred_fallthru
      _
    // Predicated region
    $region18: #{tpu_custom_call.1} parent=1 // pred_check
      _
    $region19: #{tpu_custom_call.1} parent=1 // pred_check_branch
      %49 = sbr.rel (0) target = $region21
    $region20: #{tpu_custom_call.1} parent=1 // pred_region
      %s51 = ssub.s32 16384, 16384
      %52 = vsyncadd [#allocation7], %s51
      %s53 = sshll.u32 [#allocation8], 4
      %s54 = int_to_ptr.vmem [resolvable:$true] %s53
      %59 = dma.hbm_to_vmem [thread:$0]  %s4, 16384, %s54, [#allocation7], 256, 256, 16
    $region21: #{tpu_custom_call.1} parent=1 // pred_fallthru
      _
    // Predicated region
    $region22: #{tpu_custom_call.1} parent=1 // pred_check
      _
    $region23: #{tpu_custom_call.1} parent=1 // pred_check_branch
      %61 = sbr.rel (0) target = $region25
    $region24: #{tpu_custom_call.1} parent=1 // pred_region
      _
    $region25: #{tpu_custom_call.1} parent=1 // pred_fallthru
      _
    // Predicated region
    $region26: #{tpu_custom_call.1} parent=1 // pred_check
      _
    $region27: #{tpu_custom_call.1} parent=1 // pred_check_branch
      %63 = sbr.rel (0) target = $region29
    $region28: #{tpu_custom_call.1} parent=1 // pred_region
      _
    $region29: #{tpu_custom_call.1} parent=1 // pred_fallthru
      _
    // Predicated region
    $region30: #{tpu_custom_call.1} parent=1 // pred_check
      _
    $region31: #{tpu_custom_call.1} parent=1 // pred_check_branch
      %65 = sbr.rel (0) target = $region33
    $region32: #{tpu_custom_call.1} parent=1 // pred_region
      %s67 = ssub.s32 8192, 8192
      %68 = vsyncadd [#allocation10], %s67
      %s69 = sshll.u32 [#allocation9], 4
      %s70 = int_to_ptr.vmem [resolvable:$true] %s69
      %75 = dma.hbm_to_vmem [thread:$0]  %s7, 8192, %s70, [#allocation10], 256, 256, 16
    $region33: #{tpu_custom_call.1} parent=1 // pred_fallthru
      _
    // Predicated region
    $region34: #{tpu_custom_call.1} parent=1 // pred_check
      _
    $region35: #{tpu_custom_call.1} parent=1 // pred_check_branch
      %77 = sbr.rel (0) target = $region37
    $region36: #{tpu_custom_call.1} parent=1 // pred_region
      %s79 = ssub.s32 4096, 4096
      %80 = vsyncadd [#allocation10], %s79
      %s81 = sshll.u32 [#allocation11], 4
      %s82 = int_to_ptr.vmem [resolvable:$true] %s81
      %87 = dma.hbm_to_vmem [thread:$0]  %s8, 4096, %s82, [#allocation10], 128, 128, 8
    $region37: #{tpu_custom_call.1} parent=1 // pred_fallthru
      _
    // Predicated region
    $region38: #{tpu_custom_call.1} parent=1 // pred_check
      _
    $region39: #{tpu_custom_call.1} parent=1 // pred_check_branch
      %89 = sbr.rel (0) target = $region41
    $region40: #{tpu_custom_call.1} parent=1 // pred_region
      %s91 = ssub.s32 4096, 4096
      %92 = vsyncadd [#allocation13], %s91
      %s93 = sshll.u32 [#allocation12], 4
      %s94 = int_to_ptr.vmem [resolvable:$true] %s93
      %99 = dma.hbm_to_vmem [thread:$0]  %s9, 4096, %s94, [#allocation13], 128, 128, 8
    $region41: #{tpu_custom_call.1} parent=1 // pred_fallthru
      _
    // Predicated region
    $region42: #{tpu_custom_call.1} parent=1 // pred_check
      _
    $region43: #{tpu_custom_call.1} parent=1 // pred_check_branch
      %101 = sbr.rel (0) target = $region45
    $region44: #{tpu_custom_call.1} parent=1 // pred_region
      _
    $region45: #{tpu_custom_call.1} parent=1 // pred_fallthru
      _
    // Predicated region
    $region46: #{tpu_custom_call.1} parent=1 // pred_check
      _
    $region47: #{tpu_custom_call.1} parent=1 // pred_check_branch
      %103 = sbr.rel (0) target = $region49
    $region48: #{tpu_custom_call.1} parent=1 // pred_region
      %104 = dma.done [#allocation4], 256
    $region49: #{tpu_custom_call.1} parent=1 // pred_fallthru
      _
    // Predicated region
    $region50: #{tpu_custom_call.1} parent=1 // pred_check
      _
    $region51: #{tpu_custom_call.1} parent=1 // pred_check_branch
      %106 = sbr.rel (0) target = $region53
    $region52: #{tpu_custom_call.1} parent=1 // pred_region
      %107 = dma.done [#allocation7], 16384
    $region53: #{tpu_custom_call.1} parent=1 // pred_fallthru
      _
    // Predicated region
    $region54: #{tpu_custom_call.1} parent=1 // pred_check
      _
    $region55: #{tpu_custom_call.1} parent=1 // pred_check_branch
      %109 = sbr.rel (0) target = $region57
    $region56: #{tpu_custom_call.1} parent=1 // pred_region
      %110 = dma.done [#allocation7], 16384
    $region57: #{tpu_custom_call.1} parent=1 // pred_fallthru
      _
    // Predicated region
    $region58: #{tpu_custom_call.1} parent=1 // pred_check
      _
    $region59: #{tpu_custom_call.1} parent=1 // pred_check_branch
      %112 = sbr.rel (0) target = $region61
    $region60: #{tpu_custom_call.1} parent=1 // pred_region
      %113 = dma.done [#allocation10], 8192
    $region61: #{tpu_custom_call.1} parent=1 // pred_fallthru
      _
    // Predicated region
    $region62: #{tpu_custom_call.1} parent=1 // pred_check
      _
    $region63: #{tpu_custom_call.1} parent=1 // pred_check_branch
      %115 = sbr.rel (0) target = $region65
    $region64: #{tpu_custom_call.1} parent=1 // pred_region
      %116 = dma.done [#allocation10], 4096
    $region65: #{tpu_custom_call.1} parent=1 // pred_fallthru
      _
    // Predicated region
    $region66: #{tpu_custom_call.1} parent=1 // pred_check
      _
    $region67: #{tpu_custom_call.1} parent=1 // pred_check_branch
      %118 = sbr.rel (0) target = $region69
    $region68: #{tpu_custom_call.1} parent=1 // pred_region
      %119 = dma.done [#allocation13], 4096
    $region69: #{tpu_custom_call.1} parent=1 // pred_fallthru
      _
    %v120 = vld [vmem:[#allocation3] sm:$0xff]
    %v121 = vld [vmem:[#allocation3 + $0x8] sm:$0xff]
    %v122 = vld [vmem:[%s1] sm:$0x3]
    %v123 = vld [vmem:[%s2] sm:$0x3]
    %v124 = vadd.f32 %v120, %v121
    %125 = vadd.xlane.f32.xlu0 %v124
    %v126 = vpop.xlane.xlu0 %125
    %v127 = vrcp.pop 256.0
    %v128 = vmul.f32 %v126, %v127
    %v129 = vsub.f32 %v120, %v128
    %v130 = vsub.f32 %v121, %v128
    %v131 = vmul.f32 %v129, %v129
    %v132 = vmul.f32 %v130, %v130
    %v133 = vadd.f32 %v131, %v132
    %134 = vadd.xlane.f32.xlu0 %v133
    %v135 = vpop.xlane.xlu0 %134
    %v136 = vmul.f32 %v135, %v127
    %v137 = vadd.f32 %v136, 1e-05
    %v138 = vrsqrt.pop %v137
    %v139 = vmul.f32 %v129, %v138
    %v140 = vmul.f32 %v130, %v138
    %v142 = vlaneseq
    %v143 = vshrl.u32 %v142, 7
    %v144 = vsub.s32 0, %v143
    %v145 = vrot.slane %v122, %v144
    %v146 = vlaneseq
    %v147 = vshrl.u32 %v146, 7
    %v148 = vsub.s32 1, %v147
    %v149 = vrot.slane %v122, %v148
    %v152 = vmul.f32 %v139, %v145
    %v153 = vmul.f32 %v140, %v149
    %v155 = vlaneseq
    %v156 = vshrl.u32 %v155, 7
    %v157 = vsub.s32 0, %v156
    %v158 = vrot.slane %v123, %v157
    %v159 = vlaneseq
    %v160 = vshrl.u32 %v159, 7
    %v161 = vsub.s32 1, %v160
    %v162 = vrot.slane %v123, %v161
    %v165 = vadd.f32 %v152, %v158
    %v166 = vadd.f32 %v153, %v162
    %v167 = vld [vmem:[#allocation6] sm:$0xff]
    %v168 = vld [vmem:[#allocation6 + $0x8] sm:$0xff]
    %v169 = vld [vmem:[#allocation6 + $0x10] sm:$0xff]
    %v170 = vld [vmem:[#allocation6 + $0x18] sm:$0xff]
    %v171 = vld [vmem:[#allocation6 + $0x20] sm:$0xff]
    %v172 = vld [vmem:[#allocation6 + $0x28] sm:$0xff]
    %v173 = vld [vmem:[#allocation6 + $0x30] sm:$0xff]
    %v174 = vld [vmem:[#allocation6 + $0x38] sm:$0xff]
    %v175 = vld [vmem:[#allocation6 + $0x40] sm:$0xff]
    %v176 = vld [vmem:[#allocation6 + $0x48] sm:$0xff]
    %v177 = vld [vmem:[#allocation6 + $0x50] sm:$0xff]
    %v178 = vld [vmem:[#allocation6 + $0x58] sm:$0xff]
    %v179 = vld [vmem:[#allocation6 + $0x60] sm:$0xff]
    %v180 = vld [vmem:[#allocation6 + $0x68] sm:$0xff]
    %v181 = vld [vmem:[#allocation6 + $0x70] sm:$0xff]
    %v182 = vld [vmem:[#allocation6 + $0x78] sm:$0xff]
    %v183 = vld [vmem:[#allocation6 + $0x80] sm:$0xff]
    %v184 = vld [vmem:[#allocation6 + $0x88] sm:$0xff]
    %v185 = vld [vmem:[#allocation6 + $0x90] sm:$0xff]
    %v186 = vld [vmem:[#allocation6 + $0x98] sm:$0xff]
    %v187 = vld [vmem:[#allocation6 + $0xa0] sm:$0xff]
    %v188 = vld [vmem:[#allocation6 + $0xa8] sm:$0xff]
    %v189 = vld [vmem:[#allocation6 + $0xb0] sm:$0xff]
    %v190 = vld [vmem:[#allocation6 + $0xb8] sm:$0xff]
    %v191 = vld [vmem:[#allocation6 + $0xc0] sm:$0xff]
    %v192 = vld [vmem:[#allocation6 + $0xc8] sm:$0xff]
    %v193 = vld [vmem:[#allocation6 + $0xd0] sm:$0xff]
    %v194 = vld [vmem:[#allocation6 + $0xd8] sm:$0xff]
    %v195 = vld [vmem:[#allocation6 + $0xe0] sm:$0xff]
    %v196 = vld [vmem:[#allocation6 + $0xe8] sm:$0xff]
    %v197 = vld [vmem:[#allocation6 + $0xf0] sm:$0xff]
    %v198 = vld [vmem:[#allocation6 + $0xf8] sm:$0xff]
    %v199 = vld [vmem:[#allocation6 + $0x100] sm:$0xff]
    %v200 = vld [vmem:[#allocation6 + $0x108] sm:$0xff]
    %v201 = vld [vmem:[#allocation6 + $0x110] sm:$0xff]
    %v202 = vld [vmem:[#allocation6 + $0x118] sm:$0xff]
    %v203 = vld [vmem:[#allocation6 + $0x120] sm:$0xff]
    %v204 = vld [vmem:[#allocation6 + $0x128] sm:$0xff]
    %v205 = vld [vmem:[#allocation6 + $0x130] sm:$0xff]
    %v206 = vld [vmem:[#allocation6 + $0x138] sm:$0xff]
    %v207 = vld [vmem:[#allocation6 + $0x140] sm:$0xff]
    %v208 = vld [vmem:[#allocation6 + $0x148] sm:$0xff]
    %v209 = vld [vmem:[#allocation6 + $0x150] sm:$0xff]
    %v210 = vld [vmem:[#allocation6 + $0x158] sm:$0xff]
    %v211 = vld [vmem:[#allocation6 + $0x160] sm:$0xff]
    %v212 = vld [vmem:[#allocation6 + $0x168] sm:$0xff]
    %v213 = vld [vmem:[#allocation6 + $0x170] sm:$0xff]
    %v214 = vld [vmem:[#allocation6 + $0x178] sm:$0xff]
    %v215 = vld [vmem:[#allocation6 + $0x180] sm:$0xff]
    %v216 = vld [vmem:[#allocation6 + $0x188] sm:$0xff]
    %v217 = vld [vmem:[#allocation6 + $0x190] sm:$0xff]
    %v218 = vld [vmem:[#allocation6 + $0x198] sm:$0xff]
    %v219 = vld [vmem:[#allocation6 + $0x1a0] sm:$0xff]
    %v220 = vld [vmem:[#allocation6 + $0x1a8] sm:$0xff]
    %v221 = vld [vmem:[#allocation6 + $0x1b0] sm:$0xff]
    %v222 = vld [vmem:[#allocation6 + $0x1b8] sm:$0xff]
    %v223 = vld [vmem:[#allocation6 + $0x1c0] sm:$0xff]
    %v224 = vld [vmem:[#allocation6 + $0x1c8] sm:$0xff]
    %v225 = vld [vmem:[#allocation6 + $0x1d0] sm:$0xff]
    %v226 = vld [vmem:[#allocation6 + $0x1d8] sm:$0xff]
    %v227 = vld [vmem:[#allocation6 + $0x1e0] sm:$0xff]
    %v228 = vld [vmem:[#allocation6 + $0x1e8] sm:$0xff]
    %v229 = vld [vmem:[#allocation6 + $0x1f0] sm:$0xff]
    %v230 = vld [vmem:[#allocation6 + $0x1f8] sm:$0xff]
    %v231 = vld [vmem:[#allocation6 + $0x200] sm:$0xff]
    %v232 = vld [vmem:[#allocation6 + $0x208] sm:$0xff]
    %v233 = vld [vmem:[#allocation6 + $0x210] sm:$0xff]
    %v234 = vld [vmem:[#allocation6 + $0x218] sm:$0xff]
    %v235 = vld [vmem:[#allocation6 + $0x220] sm:$0xff]
    %v236 = vld [vmem:[#allocation6 + $0x228] sm:$0xff]
    %v237 = vld [vmem:[#allocation6 + $0x230] sm:$0xff]
    %v238 = vld [vmem:[#allocation6 + $0x238] sm:$0xff]
    %v239 = vld [vmem:[#allocation6 + $0x240] sm:$0xff]
    %v240 = vld [vmem:[#allocation6 + $0x248] sm:$0xff]
    %v241 = vld [vmem:[#allocation6 + $0x250] sm:$0xff]
    %v242 = vld [vmem:[#allocation6 + $0x258] sm:$0xff]
    %v243 = vld [vmem:[#allocation6 + $0x260] sm:$0xff]
    %v244 = vld [vmem:[#allocation6 + $0x268] sm:$0xff]
    %v245 = vld [vmem:[#allocation6 + $0x270] sm:$0xff]
    %v246 = vld [vmem:[#allocation6 + $0x278] sm:$0xff]
    %v247 = vld [vmem:[#allocation6 + $0x280] sm:$0xff]
    %v248 = vld [vmem:[#allocation6 + $0x288] sm:$0xff]
    %v249 = vld [vmem:[#allocation6 + $0x290] sm:$0xff]
    %v250 = vld [vmem:[#allocation6 + $0x298] sm:$0xff]
    %v251 = vld [vmem:[#allocation6 + $0x2a0] sm:$0xff]
    %v252 = vld [vmem:[#allocation6 + $0x2a8] sm:$0xff]
    %v253 = vld [vmem:[#allocation6 + $0x2b0] sm:$0xff]
    %v254 = vld [vmem:[#allocation6 + $0x2b8] sm:$0xff]
    %v255 = vld [vmem:[#allocation6 + $0x2c0] sm:$0xff]
    %v256 = vld [vmem:[#allocation6 + $0x2c8] sm:$0xff]
    %v257 = vld [vmem:[#allocation6 + $0x2d0] sm:$0xff]
    %v258 = vld [vmem:[#allocation6 + $0x2d8] sm:$0xff]
    %v259 = vld [vmem:[#allocation6 + $0x2e0] sm:$0xff]
    %v260 = vld [vmem:[#allocation6 + $0x2e8] sm:$0xff]
    %v261 = vld [vmem:[#allocation6 + $0x2f0] sm:$0xff]
    %v262 = vld [vmem:[#allocation6 + $0x2f8] sm:$0xff]
    %v263 = vld [vmem:[#allocation6 + $0x300] sm:$0xff]
    %v264 = vld [vmem:[#allocation6 + $0x308] sm:$0xff]
    %v265 = vld [vmem:[#allocation6 + $0x310] sm:$0xff]
    %v266 = vld [vmem:[#allocation6 + $0x318] sm:$0xff]
    %v267 = vld [vmem:[#allocation6 + $0x320] sm:$0xff]
    %v268 = vld [vmem:[#allocation6 + $0x328] sm:$0xff]
    %v269 = vld [vmem:[#allocation6 + $0x330] sm:$0xff]
    %v270 = vld [vmem:[#allocation6 + $0x338] sm:$0xff]
    %v271 = vld [vmem:[#allocation6 + $0x340] sm:$0xff]
    %v272 = vld [vmem:[#allocation6 + $0x348] sm:$0xff]
    %v273 = vld [vmem:[#allocation6 + $0x350] sm:$0xff]
    %v274 = vld [vmem:[#allocation6 + $0x358] sm:$0xff]
    %v275 = vld [vmem:[#allocation6 + $0x360] sm:$0xff]
    %v276 = vld [vmem:[#allocation6 + $0x368] sm:$0xff]
    %v277 = vld [vmem:[#allocation6 + $0x370] sm:$0xff]
    %v278 = vld [vmem:[#allocation6 + $0x378] sm:$0xff]
    %v279 = vld [vmem:[#allocation6 + $0x380] sm:$0xff]
    %v280 = vld [vmem:[#allocation6 + $0x388] sm:$0xff]
    %v281 = vld [vmem:[#allocation6 + $0x390] sm:$0xff]
    %v282 = vld [vmem:[#allocation6 + $0x398] sm:$0xff]
    %v283 = vld [vmem:[#allocation6 + $0x3a0] sm:$0xff]
    %v284 = vld [vmem:[#allocation6 + $0x3a8] sm:$0xff]
    %v285 = vld [vmem:[#allocation6 + $0x3b0] sm:$0xff]
    %v286 = vld [vmem:[#allocation6 + $0x3b8] sm:$0xff]
    %v287 = vld [vmem:[#allocation6 + $0x3c0] sm:$0xff]
    %v288 = vld [vmem:[#allocation6 + $0x3c8] sm:$0xff]
    %v289 = vld [vmem:[#allocation6 + $0x3d0] sm:$0xff]
    %v290 = vld [vmem:[#allocation6 + $0x3d8] sm:$0xff]
    %v291 = vld [vmem:[#allocation6 + $0x3e0] sm:$0xff]
    %v292 = vld [vmem:[#allocation6 + $0x3e8] sm:$0xff]
    %v293 = vld [vmem:[#allocation6 + $0x3f0] sm:$0xff]
    %v294 = vld [vmem:[#allocation6 + $0x3f8] sm:$0xff]
    %295 = vmatprep.subr.mxu0 %v168
    %296 = vmatpush1.msra.mxu0 %v167
    %297 = vmatprep.subr.mxu0 %v172
    %298 = vmatpush1.msra.mxu0 %v171
    %299 = vmatprep.subr.mxu0 %v176
    %300 = vmatpush1.msra.mxu0 %v175
    %301 = vmatprep.subr.mxu0 %v180
    %302 = vmatpush1.msra.mxu0 %v179
    %303 = vmatprep.subr.mxu0 %v184
    %304 = vmatpush1.msra.mxu0 %v183
    %305 = vmatprep.subr.mxu0 %v188
    %306 = vmatpush1.msra.mxu0 %v187
    %307 = vmatprep.subr.mxu0 %v192
    %308 = vmatpush1.msra.mxu0 %v191
    %309 = vmatprep.subr.mxu0 %v196
    %310 = vmatpush1.msra.mxu0 %v195
    %311 = vmatprep.subr.mxu0 %v200
    %312 = vmatpush1.msra.mxu0 %v199
    %313 = vmatprep.subr.mxu0 %v204
    %314 = vmatpush1.msra.mxu0 %v203
    %315 = vmatprep.subr.mxu0 %v208
    %316 = vmatpush1.msra.mxu0 %v207
    %317 = vmatprep.subr.mxu0 %v212
    %318 = vmatpush1.msra.mxu0 %v211
    %319 = vmatprep.subr.mxu0 %v216
    %320 = vmatpush1.msra.mxu0 %v215
    %321 = vmatprep.subr.mxu0 %v220
    %322 = vmatpush1.msra.mxu0 %v219
    %323 = vmatprep.subr.mxu0 %v224
    %324 = vmatpush1.msra.mxu0 %v223
    %325 = vmatprep.subr.mxu0 %v228
    %326 = vmatpush1.msra.mxu0 %v227
    %327 = vmatprep.subr.mxu0 %v232
    %328 = vmatpush1.msra.mxu0 %v231
    %329 = vmatprep.subr.mxu0 %v236
    %330 = vmatpush1.msra.mxu0 %v235
    %331 = vmatprep.subr.mxu0 %v240
    %332 = vmatpush1.msra.mxu0 %v239
    %333 = vmatprep.subr.mxu0 %v244
    %334 = vmatpush1.msra.mxu0 %v243
    %335 = vmatprep.subr.mxu0 %v248
    %336 = vmatpush1.msra.mxu0 %v247
    %337 = vmatprep.subr.mxu0 %v252
    %338 = vmatpush1.msra.mxu0 %v251
    %339 = vmatprep.subr.mxu0 %v256
    %340 = vmatpush1.msra.mxu0 %v255
    %341 = vmatprep.subr.mxu0 %v260
    %342 = vmatpush1.msra.mxu0 %v259
    %343 = vmatprep.subr.mxu0 %v264
    %344 = vmatpush1.msra.mxu0 %v263
    %345 = vmatprep.subr.mxu0 %v268
    %346 = vmatpush1.msra.mxu0 %v267
    %347 = vmatprep.subr.mxu0 %v272
    %348 = vmatpush1.msra.mxu0 %v271
    %349 = vmatprep.subr.mxu0 %v276
    %350 = vmatpush1.msra.mxu0 %v275
    %351 = vmatprep.subr.mxu0 %v280
    %352 = vmatpush1.msra.mxu0 %v279
    %353 = vmatprep.subr.mxu0 %v284
    %354 = vmatpush1.msra.mxu0 %v283
    %355 = vmatprep.subr.mxu0 %v288
    %356 = vmatpush1.msra.mxu0 %v287
    %357 = vmatprep.subr.mxu0 %v292
    %358 = vmatpush1.msra.mxu0 %v291
    %359 = vmatprep.mubr.f32.mxu0 %v166
    %360 = vmatmul.mubr.f32.gmra.mrb[0].mxu0 %v165
    %v361 = vpop.f32.mrb[0].mxu0
    %v362 = vadd.f32 0.0, %v361
    %v363 = vpop.f32.mrb[0].mxu0
    %v364 = vadd.f32 0.0, %v363
    %365 = vdwg.mxu0
    %366 = vmatprep.subr.mxu0 %v170
    %367 = vmatpush1.msra.mxu0 %v169
    %368 = vmatprep.subr.mxu0 %v174
    %369 = vmatpush1.msra.mxu0 %v173
    %370 = vmatprep.subr.mxu0 %v178
    %371 = vmatpush1.msra.mxu0 %v177
    %372 = vmatprep.subr.mxu0 %v182
    %373 = vmatpush1.msra.mxu0 %v181
    %374 = vmatprep.subr.mxu0 %v186
    %375 = vmatpush1.msra.mxu0 %v185
    %376 = vmatprep.subr.mxu0 %v190
    %377 = vmatpush1.msra.mxu0 %v189
    %378 = vmatprep.subr.mxu0 %v194
    %379 = vmatpush1.msra.mxu0 %v193
    %380 = vmatprep.subr.mxu0 %v198
    %381 = vmatpush1.msra.mxu0 %v197
    %382 = vmatprep.subr.mxu0 %v202
    %383 = vmatpush1.msra.mxu0 %v201
    %384 = vmatprep.subr.mxu0 %v206
    %385 = vmatpush1.msra.mxu0 %v205
    %386 = vmatprep.subr.mxu0 %v210
    %387 = vmatpush1.msra.mxu0 %v209
    %388 = vmatprep.subr.mxu0 %v214
    %389 = vmatpush1.msra.mxu0 %v213
    %390 = vmatprep.subr.mxu0 %v218
    %391 = vmatpush1.msra.mxu0 %v217
    %392 = vmatprep.subr.mxu0 %v222
    %393 = vmatpush1.msra.mxu0 %v221
    %394 = vmatprep.subr.mxu0 %v226
    %395 = vmatpush1.msra.mxu0 %v225
    %396 = vmatprep.subr.mxu0 %v230
    %397 = vmatpush1.msra.mxu0 %v229
    %398 = vmatprep.subr.mxu0 %v234
    %399 = vmatpush1.msra.mxu0 %v233
    %400 = vmatprep.subr.mxu0 %v238
    %401 = vmatpush1.msra.mxu0 %v237
    %402 = vmatprep.subr.mxu0 %v242
    %403 = vmatpush1.msra.mxu0 %v241
    %404 = vmatprep.subr.mxu0 %v246
    %405 = vmatpush1.msra.mxu0 %v245
    %406 = vmatprep.subr.mxu0 %v250
    %407 = vmatpush1.msra.mxu0 %v249
    %408 = vmatprep.subr.mxu0 %v254
    %409 = vmatpush1.msra.mxu0 %v253
    %410 = vmatprep.subr.mxu0 %v258
    %411 = vmatpush1.msra.mxu0 %v257
    %412 = vmatprep.subr.mxu0 %v262
    %413 = vmatpush1.msra.mxu0 %v261
    %414 = vmatprep.subr.mxu0 %v266
    %415 = vmatpush1.msra.mxu0 %v265
    %416 = vmatprep.subr.mxu0 %v270
    %417 = vmatpush1.msra.mxu0 %v269
    %418 = vmatprep.subr.mxu0 %v274
    %419 = vmatpush1.msra.mxu0 %v273
    %420 = vmatprep.subr.mxu0 %v278
    %421 = vmatpush1.msra.mxu0 %v277
    %422 = vmatprep.subr.mxu0 %v282
    %423 = vmatpush1.msra.mxu0 %v281
    %424 = vmatprep.subr.mxu0 %v286
    %425 = vmatpush1.msra.mxu0 %v285
    %426 = vmatprep.subr.mxu0 %v290
    %427 = vmatpush1.msra.mxu0 %v289
    %428 = vmatprep.subr.mxu0 %v294
    %429 = vmatpush1.msra.mxu0 %v293
    %430 = vmatprep.mubr.f32.mxu0 %v166
    %431 = vmatmul.mubr.f32.gmra.mrb[0].mxu0 %v165
    %v432 = vpop.f32.mrb[0].mxu0
    %v433 = vadd.f32 0.0, %v432
    %v434 = vpop.f32.mrb[0].mxu0
    %v435 = vadd.f32 0.0, %v434
    %436 = vdwg.mxu0
    %v437 = vadd.f32 %v362, 3.0
    %v438 = vadd.f32 %v364, 3.0
    %v439 = vadd.f32 %v433, 3.0
    %v440 = vadd.f32 %v435, 3.0
    %v441 = vmax.f32 %v437, 0.0
    %v442 = vmax.f32 %v438, 0.0
    %v443 = vmax.f32 %v439, 0.0
    %v444 = vmax.f32 %v440, 0.0
    %v445 = vmin.f32 %v441, 6.0
    %v446 = vmin.f32 %v442, 6.0
    %v447 = vmin.f32 %v443, 6.0
    %v448 = vmin.f32 %v444, 6.0
    %v449 = vmul.f32 %v362, %v445
    %v450 = vmul.f32 %v364, %v446
    %v451 = vmul.f32 %v433, %v447
    %v452 = vmul.f32 %v435, %v448
    %v453 = vld [vmem:[#allocation8] sm:$0xff]
    %v454 = vld [vmem:[#allocation8 + $0x8] sm:$0xff]
    %v455 = vld [vmem:[#allocation8 + $0x10] sm:$0xff]
    %v456 = vld [vmem:[#allocation8 + $0x18] sm:$0xff]
    %v457 = vld [vmem:[#allocation8 + $0x20] sm:$0xff]
    %v458 = vld [vmem:[#allocation8 + $0x28] sm:$0xff]
    %v459 = vld [vmem:[#allocation8 + $0x30] sm:$0xff]
    %v460 = vld [vmem:[#allocation8 + $0x38] sm:$0xff]
    %v461 = vld [vmem:[#allocation8 + $0x40] sm:$0xff]
    %v462 = vld [vmem:[#allocation8 + $0x48] sm:$0xff]
    %v463 = vld [vmem:[#allocation8 + $0x50] sm:$0xff]
    %v464 = vld [vmem:[#allocation8 + $0x58] sm:$0xff]
    %v465 = vld [vmem:[#allocation8 + $0x60] sm:$0xff]
    %v466 = vld [vmem:[#allocation8 + $0x68] sm:$0xff]
    %v467 = vld [vmem:[#allocation8 + $0x70] sm:$0xff]
    %v468 = vld [vmem:[#allocation8 + $0x78] sm:$0xff]
    %v469 = vld [vmem:[#allocation8 + $0x80] sm:$0xff]
    %v470 = vld [vmem:[#allocation8 + $0x88] sm:$0xff]
    %v471 = vld [vmem:[#allocation8 + $0x90] sm:$0xff]
    %v472 = vld [vmem:[#allocation8 + $0x98] sm:$0xff]
    %v473 = vld [vmem:[#allocation8 + $0xa0] sm:$0xff]
    %v474 = vld [vmem:[#allocation8 + $0xa8] sm:$0xff]
    %v475 = vld [vmem:[#allocation8 + $0xb0] sm:$0xff]
    %v476 = vld [vmem:[#allocation8 + $0xb8] sm:$0xff]
    %v477 = vld [vmem:[#allocation8 + $0xc0] sm:$0xff]
    %v478 = vld [vmem:[#allocation8 + $0xc8] sm:$0xff]
    %v479 = vld [vmem:[#allocation8 + $0xd0] sm:$0xff]
    %v480 = vld [vmem:[#allocation8 + $0xd8] sm:$0xff]
    %v481 = vld [vmem:[#allocation8 + $0xe0] sm:$0xff]
    %v482 = vld [vmem:[#allocation8 + $0xe8] sm:$0xff]
    %v483 = vld [vmem:[#allocation8 + $0xf0] sm:$0xff]
    %v484 = vld [vmem:[#allocation8 + $0xf8] sm:$0xff]
    %v485 = vld [vmem:[#allocation8 + $0x100] sm:$0xff]
    %v486 = vld [vmem:[#allocation8 + $0x108] sm:$0xff]
    %v487 = vld [vmem:[#allocation8 + $0x110] sm:$0xff]
    %v488 = vld [vmem:[#allocation8 + $0x118] sm:$0xff]
    %v489 = vld [vmem:[#allocation8 + $0x120] sm:$0xff]
    %v490 = vld [vmem:[#allocation8 + $0x128] sm:$0xff]
    %v491 = vld [vmem:[#allocation8 + $0x130] sm:$0xff]
    %v492 = vld [vmem:[#allocation8 + $0x138] sm:$0xff]
    %v493 = vld [vmem:[#allocation8 + $0x140] sm:$0xff]
    %v494 = vld [vmem:[#allocation8 + $0x148] sm:$0xff]
    %v495 = vld [vmem:[#allocation8 + $0x150] sm:$0xff]
    %v496 = vld [vmem:[#allocation8 + $0x158] sm:$0xff]
    %v497 = vld [vmem:[#allocation8 + $0x160] sm:$0xff]
    %v498 = vld [vmem:[#allocation8 + $0x168] sm:$0xff]
    %v499 = vld [vmem:[#allocation8 + $0x170] sm:$0xff]
    %v500 = vld [vmem:[#allocation8 + $0x178] sm:$0xff]
    %v501 = vld [vmem:[#allocation8 + $0x180] sm:$0xff]
    %v502 = vld [vmem:[#allocation8 + $0x188] sm:$0xff]
    %v503 = vld [vmem:[#allocation8 + $0x190] sm:$0xff]
    %v504 = vld [vmem:[#allocation8 + $0x198] sm:$0xff]
    %v505 = vld [vmem:[#allocation8 + $0x1a0] sm:$0xff]
    %v506 = vld [vmem:[#allocation8 + $0x1a8] sm:$0xff]
    %v507 = vld [vmem:[#allocation8 + $0x1b0] sm:$0xff]
    %v508 = vld [vmem:[#allocation8 + $0x1b8] sm:$0xff]
    %v509 = vld [vmem:[#allocation8 + $0x1c0] sm:$0xff]
    %v510 = vld [vmem:[#allocation8 + $0x1c8] sm:$0xff]
    %v511 = vld [vmem:[#allocation8 + $0x1d0] sm:$0xff]
    %v512 = vld [vmem:[#allocation8 + $0x1d8] sm:$0xff]
    %v513 = vld [vmem:[#allocation8 + $0x1e0] sm:$0xff]
    %v514 = vld [vmem:[#allocation8 + $0x1e8] sm:$0xff]
    %v515 = vld [vmem:[#allocation8 + $0x1f0] sm:$0xff]
    %v516 = vld [vmem:[#allocation8 + $0x1f8] sm:$0xff]
    %v517 = vld [vmem:[#allocation8 + $0x200] sm:$0xff]
    %v518 = vld [vmem:[#allocation8 + $0x208] sm:$0xff]
    %v519 = vld [vmem:[#allocation8 + $0x210] sm:$0xff]
    %v520 = vld [vmem:[#allocation8 + $0x218] sm:$0xff]
    %v521 = vld [vmem:[#allocation8 + $0x220] sm:$0xff]
    %v522 = vld [vmem:[#allocation8 + $0x228] sm:$0xff]
    %v523 = vld [vmem:[#allocation8 + $0x230] sm:$0xff]
    %v524 = vld [vmem:[#allocation8 + $0x238] sm:$0xff]
    %v525 = vld [vmem:[#allocation8 + $0x240] sm:$0xff]
    %v526 = vld [vmem:[#allocation8 + $0x248] sm:$0xff]
    %v527 = vld [vmem:[#allocation8 + $0x250] sm:$0xff]
    %v528 = vld [vmem:[#allocation8 + $0x258] sm:$0xff]
    %v529 = vld [vmem:[#allocation8 + $0x260] sm:$0xff]
    %v530 = vld [vmem:[#allocation8 + $0x268] sm:$0xff]
    %v531 = vld [vmem:[#allocation8 + $0x270] sm:$0xff]
    %v532 = vld [vmem:[#allocation8 + $0x278] sm:$0xff]
    %v533 = vld [vmem:[#allocation8 + $0x280] sm:$0xff]
    %v534 = vld [vmem:[#allocation8 + $0x288] sm:$0xff]
    %v535 = vld [vmem:[#allocation8 + $0x290] sm:$0xff]
    %v536 = vld [vmem:[#allocation8 + $0x298] sm:$0xff]
    %v537 = vld [vmem:[#allocation8 + $0x2a0] sm:$0xff]
    %v538 = vld [vmem:[#allocation8 + $0x2a8] sm:$0xff]
    %v539 = vld [vmem:[#allocation8 + $0x2b0] sm:$0xff]
    %v540 = vld [vmem:[#allocation8 + $0x2b8] sm:$0xff]
    %v541 = vld [vmem:[#allocation8 + $0x2c0] sm:$0xff]
    %v542 = vld [vmem:[#allocation8 + $0x2c8] sm:$0xff]
    %v543 = vld [vmem:[#allocation8 + $0x2d0] sm:$0xff]
    %v544 = vld [vmem:[#allocation8 + $0x2d8] sm:$0xff]
    %v545 = vld [vmem:[#allocation8 + $0x2e0] sm:$0xff]
    %v546 = vld [vmem:[#allocation8 + $0x2e8] sm:$0xff]
    %v547 = vld [vmem:[#allocation8 + $0x2f0] sm:$0xff]
    %v548 = vld [vmem:[#allocation8 + $0x2f8] sm:$0xff]
    %v549 = vld [vmem:[#allocation8 + $0x300] sm:$0xff]
    %v550 = vld [vmem:[#allocation8 + $0x308] sm:$0xff]
    %v551 = vld [vmem:[#allocation8 + $0x310] sm:$0xff]
    %v552 = vld [vmem:[#allocation8 + $0x318] sm:$0xff]
    %v553 = vld [vmem:[#allocation8 + $0x320] sm:$0xff]
    %v554 = vld [vmem:[#allocation8 + $0x328] sm:$0xff]
    %v555 = vld [vmem:[#allocation8 + $0x330] sm:$0xff]
    %v556 = vld [vmem:[#allocation8 + $0x338] sm:$0xff]
    %v557 = vld [vmem:[#allocation8 + $0x340] sm:$0xff]
    %v558 = vld [vmem:[#allocation8 + $0x348] sm:$0xff]
    %v559 = vld [vmem:[#allocation8 + $0x350] sm:$0xff]
    %v560 = vld [vmem:[#allocation8 + $0x358] sm:$0xff]
    %v561 = vld [vmem:[#allocation8 + $0x360] sm:$0xff]
    %v562 = vld [vmem:[#allocation8 + $0x368] sm:$0xff]
    %v563 = vld [vmem:[#allocation8 + $0x370] sm:$0xff]
    %v564 = vld [vmem:[#allocation8 + $0x378] sm:$0xff]
    %v565 = vld [vmem:[#allocation8 + $0x380] sm:$0xff]
    %v566 = vld [vmem:[#allocation8 + $0x388] sm:$0xff]
    %v567 = vld [vmem:[#allocation8 + $0x390] sm:$0xff]
    %v568 = vld [vmem:[#allocation8 + $0x398] sm:$0xff]
    %v569 = vld [vmem:[#allocation8 + $0x3a0] sm:$0xff]
    %v570 = vld [vmem:[#allocation8 + $0x3a8] sm:$0xff]
    %v571 = vld [vmem:[#allocation8 + $0x3b0] sm:$0xff]
    %v572 = vld [vmem:[#allocation8 + $0x3b8] sm:$0xff]
    %v573 = vld [vmem:[#allocation8 + $0x3c0] sm:$0xff]
    %v574 = vld [vmem:[#allocation8 + $0x3c8] sm:$0xff]
    %v575 = vld [vmem:[#allocation8 + $0x3d0] sm:$0xff]
    %v576 = vld [vmem:[#allocation8 + $0x3d8] sm:$0xff]
    %v577 = vld [vmem:[#allocation8 + $0x3e0] sm:$0xff]
    %v578 = vld [vmem:[#allocation8 + $0x3e8] sm:$0xff]
    %v579 = vld [vmem:[#allocation8 + $0x3f0] sm:$0xff]
    %v580 = vld [vmem:[#allocation8 + $0x3f8] sm:$0xff]
    %581 = vmatprep.subr.mxu0 %v454
    %582 = vmatpush1.msra.mxu0 %v453
    %583 = vmatprep.subr.mxu0 %v456
    %584 = vmatpush1.msra.mxu0 %v455
    %585 = vmatprep.subr.mxu0 %v458
    %586 = vmatpush1.msra.mxu0 %v457
    %587 = vmatprep.subr.mxu0 %v460
    %588 = vmatpush1.msra.mxu0 %v459
    %589 = vmatprep.subr.mxu0 %v462
    %590 = vmatpush1.msra.mxu0 %v461
    %591 = vmatprep.subr.mxu0 %v464
    %592 = vmatpush1.msra.mxu0 %v463
    %593 = vmatprep.subr.mxu0 %v466
    %594 = vmatpush1.msra.mxu0 %v465
    %595 = vmatprep.subr.mxu0 %v468
    %596 = vmatpush1.msra.mxu0 %v467
    %597 = vmatprep.subr.mxu0 %v470
    %598 = vmatpush1.msra.mxu0 %v469
    %599 = vmatprep.subr.mxu0 %v472
    %600 = vmatpush1.msra.mxu0 %v471
    %601 = vmatprep.subr.mxu0 %v474
    %602 = vmatpush1.msra.mxu0 %v473
    %603 = vmatprep.subr.mxu0 %v476
    %604 = vmatpush1.msra.mxu0 %v475
    %605 = vmatprep.subr.mxu0 %v478
    %606 = vmatpush1.msra.mxu0 %v477
    %607 = vmatprep.subr.mxu0 %v480
    %608 = vmatpush1.msra.mxu0 %v479
    %609 = vmatprep.subr.mxu0 %v482
    %610 = vmatpush1.msra.mxu0 %v481
    %611 = vmatprep.subr.mxu0 %v484
    %612 = vmatpush1.msra.mxu0 %v483
    %613 = vmatprep.subr.mxu0 %v486
    %614 = vmatpush1.msra.mxu0 %v485
    %615 = vmatprep.subr.mxu0 %v488
    %616 = vmatpush1.msra.mxu0 %v487
    %617 = vmatprep.subr.mxu0 %v490
    %618 = vmatpush1.msra.mxu0 %v489
    %619 = vmatprep.subr.mxu0 %v492
    %620 = vmatpush1.msra.mxu0 %v491
    %621 = vmatprep.subr.mxu0 %v494
    %622 = vmatpush1.msra.mxu0 %v493
    %623 = vmatprep.subr.mxu0 %v496
    %624 = vmatpush1.msra.mxu0 %v495
    %625 = vmatprep.subr.mxu0 %v498
    %626 = vmatpush1.msra.mxu0 %v497
    %627 = vmatprep.subr.mxu0 %v500
    %628 = vmatpush1.msra.mxu0 %v499
    %629 = vmatprep.subr.mxu0 %v502
    %630 = vmatpush1.msra.mxu0 %v501
    %631 = vmatprep.subr.mxu0 %v504
    %632 = vmatpush1.msra.mxu0 %v503
    %633 = vmatprep.subr.mxu0 %v506
    %634 = vmatpush1.msra.mxu0 %v505
    %635 = vmatprep.subr.mxu0 %v508
    %636 = vmatpush1.msra.mxu0 %v507
    %637 = vmatprep.subr.mxu0 %v510
    %638 = vmatpush1.msra.mxu0 %v509
    %639 = vmatprep.subr.mxu0 %v512
    %640 = vmatpush1.msra.mxu0 %v511
    %641 = vmatprep.subr.mxu0 %v514
    %642 = vmatpush1.msra.mxu0 %v513
    %643 = vmatprep.subr.mxu0 %v516
    %644 = vmatpush1.msra.mxu0 %v515
    %645 = vmatprep.mubr.f32.mxu0 %v450
    %646 = vmatmul.mubr.f32.gmra.mrb[0].mxu0 %v449
    %v647 = vpop.f32.mrb[0].mxu0
    %v648 = vadd.f32 0.0, %v647
    %v649 = vpop.f32.mrb[0].mxu0
    %v650 = vadd.f32 0.0, %v649
    %651 = vdwg.mxu0
    %652 = vmatprep.subr.mxu0 %v518
    %653 = vmatpush1.msra.mxu0 %v517
    %654 = vmatprep.subr.mxu0 %v520
    %655 = vmatpush1.msra.mxu0 %v519
    %656 = vmatprep.subr.mxu0 %v522
    %657 = vmatpush1.msra.mxu0 %v521
    %658 = vmatprep.subr.mxu0 %v524
    %659 = vmatpush1.msra.mxu0 %v523
    %660 = vmatprep.subr.mxu0 %v526
    %661 = vmatpush1.msra.mxu0 %v525
    %662 = vmatprep.subr.mxu0 %v528
    %663 = vmatpush1.msra.mxu0 %v527
    %664 = vmatprep.subr.mxu0 %v530
    %665 = vmatpush1.msra.mxu0 %v529
    %666 = vmatprep.subr.mxu0 %v532
    %667 = vmatpush1.msra.mxu0 %v531
    %668 = vmatprep.subr.mxu0 %v534
    %669 = vmatpush1.msra.mxu0 %v533
    %670 = vmatprep.subr.mxu0 %v536
    %671 = vmatpush1.msra.mxu0 %v535
    %672 = vmatprep.subr.mxu0 %v538
    %673 = vmatpush1.msra.mxu0 %v537
    %674 = vmatprep.subr.mxu0 %v540
    %675 = vmatpush1.msra.mxu0 %v539
    %676 = vmatprep.subr.mxu0 %v542
    %677 = vmatpush1.msra.mxu0 %v541
    %678 = vmatprep.subr.mxu0 %v544
    %679 = vmatpush1.msra.mxu0 %v543
    %680 = vmatprep.subr.mxu0 %v546
    %681 = vmatpush1.msra.mxu0 %v545
    %682 = vmatprep.subr.mxu0 %v548
    %683 = vmatpush1.msra.mxu0 %v547
    %684 = vmatprep.subr.mxu0 %v550
    %685 = vmatpush1.msra.mxu0 %v549
    %686 = vmatprep.subr.mxu0 %v552
    %687 = vmatpush1.msra.mxu0 %v551
    %688 = vmatprep.subr.mxu0 %v554
    %689 = vmatpush1.msra.mxu0 %v553
    %690 = vmatprep.subr.mxu0 %v556
    %691 = vmatpush1.msra.mxu0 %v555
    %692 = vmatprep.subr.mxu0 %v558
    %693 = vmatpush1.msra.mxu0 %v557
    %694 = vmatprep.subr.mxu0 %v560
    %695 = vmatpush1.msra.mxu0 %v559
    %696 = vmatprep.subr.mxu0 %v562
    %697 = vmatpush1.msra.mxu0 %v561
    %698 = vmatprep.subr.mxu0 %v564
    %699 = vmatpush1.msra.mxu0 %v563
    %700 = vmatprep.subr.mxu0 %v566
    %701 = vmatpush1.msra.mxu0 %v565
    %702 = vmatprep.subr.mxu0 %v568
    %703 = vmatpush1.msra.mxu0 %v567
    %704 = vmatprep.subr.mxu0 %v570
    %705 = vmatpush1.msra.mxu0 %v569
    %706 = vmatprep.subr.mxu0 %v572
    %707 = vmatpush1.msra.mxu0 %v571
    %708 = vmatprep.subr.mxu0 %v574
    %709 = vmatpush1.msra.mxu0 %v573
    %710 = vmatprep.subr.mxu0 %v576
    %711 = vmatpush1.msra.mxu0 %v575
    %712 = vmatprep.subr.mxu0 %v578
    %713 = vmatpush1.msra.mxu0 %v577
    %714 = vmatprep.subr.mxu0 %v580
    %715 = vmatpush1.msra.mxu0 %v579
    %716 = vmatprep.mubr.f32.mxu0 %v452
    %717 = vmatmul.mubr.f32.gmra.mrb[0].mxu0 %v451
    %v718 = vpop.f32.mrb[0].mxu0
    %v719 = vadd.f32 %v648, %v718
    %v720 = vpop.f32.mrb[0].mxu0
    %v721 = vadd.f32 %v650, %v720
    %722 = vdwg.mxu0
    %v723 = vadd.f32 %v120, %v719
    %v724 = vadd.f32 %v121, %v721
    %v725 = vld [vmem:[%s5] sm:$0x3]
    %v726 = vld [vmem:[%s6] sm:$0x3]
    %v727 = vadd.f32 %v723, %v724
    %728 = vadd.xlane.f32.xlu0 %v727
    %v729 = vpop.xlane.xlu0 %728
    %v730 = vmul.f32 %v729, %v127
    %v731 = vsub.f32 %v723, %v730
    %v732 = vsub.f32 %v724, %v730
    %v733 = vmul.f32 %v731, %v731
    %v734 = vmul.f32 %v732, %v732
    %v735 = vadd.f32 %v733, %v734
    %736 = vadd.xlane.f32.xlu0 %v735
    %v737 = vpop.xlane.xlu0 %736
    %v738 = vmul.f32 %v737, %v127
    %v739 = vadd.f32 %v738, 1e-05
    %v740 = vrsqrt.pop %v739
    %v741 = vmul.f32 %v731, %v740
    %v742 = vmul.f32 %v732, %v740
    %v744 = vlaneseq
    %v745 = vshrl.u32 %v744, 7
    %v746 = vsub.s32 0, %v745
    %v747 = vrot.slane %v725, %v746
    %v748 = vlaneseq
    %v749 = vshrl.u32 %v748, 7
    %v750 = vsub.s32 1, %v749
    %v751 = vrot.slane %v725, %v750
    %v754 = vmul.f32 %v741, %v747
    %v755 = vmul.f32 %v742, %v751
    %v757 = vlaneseq
    %v758 = vshrl.u32 %v757, 7
    %v759 = vsub.s32 0, %v758
    %v760 = vrot.slane %v726, %v759
    %v761 = vlaneseq
    %v762 = vshrl.u32 %v761, 7
    %v763 = vsub.s32 1, %v762
    %v764 = vrot.slane %v726, %v763
    %v767 = vadd.f32 %v754, %v760
    %v768 = vadd.f32 %v755, %v764
    %v769 = vld [vmem:[#allocation9] sm:$0xff]
    %v770 = vld [vmem:[#allocation9 + $0x8] sm:$0xff]
    %v771 = vld [vmem:[#allocation9 + $0x10] sm:$0xff]
    %v772 = vld [vmem:[#allocation9 + $0x18] sm:$0xff]
    %v773 = vld [vmem:[#allocation9 + $0x20] sm:$0xff]
    %v774 = vld [vmem:[#allocation9 + $0x28] sm:$0xff]
    %v775 = vld [vmem:[#allocation9 + $0x30] sm:$0xff]
    %v776 = vld [vmem:[#allocation9 + $0x38] sm:$0xff]
    %v777 = vld [vmem:[#allocation9 + $0x40] sm:$0xff]
    %v778 = vld [vmem:[#allocation9 + $0x48] sm:$0xff]
    %v779 = vld [vmem:[#allocation9 + $0x50] sm:$0xff]
    %v780 = vld [vmem:[#allocation9 + $0x58] sm:$0xff]
    %v781 = vld [vmem:[#allocation9 + $0x60] sm:$0xff]
    %v782 = vld [vmem:[#allocation9 + $0x68] sm:$0xff]
    %v783 = vld [vmem:[#allocation9 + $0x70] sm:$0xff]
    %v784 = vld [vmem:[#allocation9 + $0x78] sm:$0xff]
    %v785 = vld [vmem:[#allocation9 + $0x80] sm:$0xff]
    %v786 = vld [vmem:[#allocation9 + $0x88] sm:$0xff]
    %v787 = vld [vmem:[#allocation9 + $0x90] sm:$0xff]
    %v788 = vld [vmem:[#allocation9 + $0x98] sm:$0xff]
    %v789 = vld [vmem:[#allocation9 + $0xa0] sm:$0xff]
    %v790 = vld [vmem:[#allocation9 + $0xa8] sm:$0xff]
    %v791 = vld [vmem:[#allocation9 + $0xb0] sm:$0xff]
    %v792 = vld [vmem:[#allocation9 + $0xb8] sm:$0xff]
    %v793 = vld [vmem:[#allocation9 + $0xc0] sm:$0xff]
    %v794 = vld [vmem:[#allocation9 + $0xc8] sm:$0xff]
    %v795 = vld [vmem:[#allocation9 + $0xd0] sm:$0xff]
    %v796 = vld [vmem:[#allocation9 + $0xd8] sm:$0xff]
    %v797 = vld [vmem:[#allocation9 + $0xe0] sm:$0xff]
    %v798 = vld [vmem:[#allocation9 + $0xe8] sm:$0xff]
    %v799 = vld [vmem:[#allocation9 + $0xf0] sm:$0xff]
    %v800 = vld [vmem:[#allocation9 + $0xf8] sm:$0xff]
    %v801 = vld [vmem:[#allocation9 + $0x100] sm:$0xff]
    %v802 = vld [vmem:[#allocation9 + $0x108] sm:$0xff]
    %v803 = vld [vmem:[#allocation9 + $0x110] sm:$0xff]
    %v804 = vld [vmem:[#allocation9 + $0x118] sm:$0xff]
    %v805 = vld [vmem:[#allocation9 + $0x120] sm:$0xff]
    %v806 = vld [vmem:[#allocation9 + $0x128] sm:$0xff]
    %v807 = vld [vmem:[#allocation9 + $0x130] sm:$0xff]
    %v808 = vld [vmem:[#allocation9 + $0x138] sm:$0xff]
    %v809 = vld [vmem:[#allocation9 + $0x140] sm:$0xff]
    %v810 = vld [vmem:[#allocation9 + $0x148] sm:$0xff]
    %v811 = vld [vmem:[#allocation9 + $0x150] sm:$0xff]
    %v812 = vld [vmem:[#allocation9 + $0x158] sm:$0xff]
    %v813 = vld [vmem:[#allocation9 + $0x160] sm:$0xff]
    %v814 = vld [vmem:[#allocation9 + $0x168] sm:$0xff]
    %v815 = vld [vmem:[#allocation9 + $0x170] sm:$0xff]
    %v816 = vld [vmem:[#allocation9 + $0x178] sm:$0xff]
    %v817 = vld [vmem:[#allocation9 + $0x180] sm:$0xff]
    %v818 = vld [vmem:[#allocation9 + $0x188] sm:$0xff]
    %v819 = vld [vmem:[#allocation9 + $0x190] sm:$0xff]
    %v820 = vld [vmem:[#allocation9 + $0x198] sm:$0xff]
    %v821 = vld [vmem:[#allocation9 + $0x1a0] sm:$0xff]
    %v822 = vld [vmem:[#allocation9 + $0x1a8] sm:$0xff]
    %v823 = vld [vmem:[#allocation9 + $0x1b0] sm:$0xff]
    %v824 = vld [vmem:[#allocation9 + $0x1b8] sm:$0xff]
    %v825 = vld [vmem:[#allocation9 + $0x1c0] sm:$0xff]
    %v826 = vld [vmem:[#allocation9 + $0x1c8] sm:$0xff]
    %v827 = vld [vmem:[#allocation9 + $0x1d0] sm:$0xff]
    %v828 = vld [vmem:[#allocation9 + $0x1d8] sm:$0xff]
    %v829 = vld [vmem:[#allocation9 + $0x1e0] sm:$0xff]
    %v830 = vld [vmem:[#allocation9 + $0x1e8] sm:$0xff]
    %v831 = vld [vmem:[#allocation9 + $0x1f0] sm:$0xff]
    %v832 = vld [vmem:[#allocation9 + $0x1f8] sm:$0xff]
    %833 = vmatprep.subr.mxu0 %v770
    %834 = vmatpush1.msra.mxu0 %v769
    %835 = vmatprep.subr.mxu0 %v772
    %836 = vmatpush1.msra.mxu0 %v771
    %837 = vmatprep.subr.mxu0 %v774
    %838 = vmatpush1.msra.mxu0 %v773
    %839 = vmatprep.subr.mxu0 %v776
    %840 = vmatpush1.msra.mxu0 %v775
    %841 = vmatprep.subr.mxu0 %v778
    %842 = vmatpush1.msra.mxu0 %v777
    %843 = vmatprep.subr.mxu0 %v780
    %844 = vmatpush1.msra.mxu0 %v779
    %845 = vmatprep.subr.mxu0 %v782
    %846 = vmatpush1.msra.mxu0 %v781
    %847 = vmatprep.subr.mxu0 %v784
    %848 = vmatpush1.msra.mxu0 %v783
    %849 = vmatprep.subr.mxu0 %v786
    %850 = vmatpush1.msra.mxu0 %v785
    %851 = vmatprep.subr.mxu0 %v788
    %852 = vmatpush1.msra.mxu0 %v787
    %853 = vmatprep.subr.mxu0 %v790
    %854 = vmatpush1.msra.mxu0 %v789
    %855 = vmatprep.subr.mxu0 %v792
    %856 = vmatpush1.msra.mxu0 %v791
    %857 = vmatprep.subr.mxu0 %v794
    %858 = vmatpush1.msra.mxu0 %v793
    %859 = vmatprep.subr.mxu0 %v796
    %860 = vmatpush1.msra.mxu0 %v795
    %861 = vmatprep.subr.mxu0 %v798
    %862 = vmatpush1.msra.mxu0 %v797
    %863 = vmatprep.subr.mxu0 %v800
    %864 = vmatpush1.msra.mxu0 %v799
    %865 = vmatprep.subr.mxu0 %v802
    %866 = vmatpush1.msra.mxu0 %v801
    %867 = vmatprep.subr.mxu0 %v804
    %868 = vmatpush1.msra.mxu0 %v803
    %869 = vmatprep.subr.mxu0 %v806
    %870 = vmatpush1.msra.mxu0 %v805
    %871 = vmatprep.subr.mxu0 %v808
    %872 = vmatpush1.msra.mxu0 %v807
    %873 = vmatprep.subr.mxu0 %v810
    %874 = vmatpush1.msra.mxu0 %v809
    %875 = vmatprep.subr.mxu0 %v812
    %876 = vmatpush1.msra.mxu0 %v811
    %877 = vmatprep.subr.mxu0 %v814
    %878 = vmatpush1.msra.mxu0 %v813
    %879 = vmatprep.subr.mxu0 %v816
    %880 = vmatpush1.msra.mxu0 %v815
    %881 = vmatprep.subr.mxu0 %v818
    %882 = vmatpush1.msra.mxu0 %v817
    %883 = vmatprep.subr.mxu0 %v820
    %884 = vmatpush1.msra.mxu0 %v819
    %885 = vmatprep.subr.mxu0 %v822
    %886 = vmatpush1.msra.mxu0 %v821
    %887 = vmatprep.subr.mxu0 %v824
    %888 = vmatpush1.msra.mxu0 %v823
    %889 = vmatprep.subr.mxu0 %v826
    %890 = vmatpush1.msra.mxu0 %v825
    %891 = vmatprep.subr.mxu0 %v828
    %892 = vmatpush1.msra.mxu0 %v827
    %893 = vmatprep.subr.mxu0 %v830
    %894 = vmatpush1.msra.mxu0 %v829
    %895 = vmatprep.subr.mxu0 %v832
    %896 = vmatpush1.msra.mxu0 %v831
    %897 = vmatprep.mubr.f32.mxu0 %v768
    %898 = vmatmul.mubr.f32.gmra.mrb[0].mxu0 %v767
    %v899 = vpop.f32.mrb[0].mxu0
    %v900 = vadd.f32 0.0, %v899
    %v901 = vpop.f32.mrb[0].mxu0
    %v902 = vadd.f32 0.0, %v901
    %903 = vdwg.mxu0
    %v904 = vadd.f32 %v900, 3.0
    %v905 = vadd.f32 %v902, 3.0
    %v906 = vmax.f32 %v904, 0.0
    %v907 = vmax.f32 %v905, 0.0
    %v908 = vmin.f32 %v906, 6.0
    %v909 = vmin.f32 %v907, 6.0
    %v910 = vmul.f32 %v900, %v908
    %v911 = vmul.f32 %v902, %v909
    %v912 = vld [vmem:[#allocation12] sm:$0xff]
    %v913 = vld [vmem:[#allocation12 + $0x8] sm:$0xff]
    %v914 = vld [vmem:[#allocation12 + $0x10] sm:$0xff]
    %v915 = vld [vmem:[#allocation12 + $0x18] sm:$0xff]
    %v916 = vld [vmem:[#allocation12 + $0x20] sm:$0xff]
    %v917 = vld [vmem:[#allocation12 + $0x28] sm:$0xff]
    %v918 = vld [vmem:[#allocation12 + $0x30] sm:$0xff]
    %v919 = vld [vmem:[#allocation12 + $0x38] sm:$0xff]
    %v920 = vld [vmem:[#allocation12 + $0x40] sm:$0xff]
    %v921 = vld [vmem:[#allocation12 + $0x48] sm:$0xff]
    %v922 = vld [vmem:[#allocation12 + $0x50] sm:$0xff]
    %v923 = vld [vmem:[#allocation12 + $0x58] sm:$0xff]
    %v924 = vld [vmem:[#allocation12 + $0x60] sm:$0xff]
    %v925 = vld [vmem:[#allocation12 + $0x68] sm:$0xff]
    %v926 = vld [vmem:[#allocation12 + $0x70] sm:$0xff]
    %v927 = vld [vmem:[#allocation12 + $0x78] sm:$0xff]
    %v928 = vld [vmem:[#allocation12 + $0x80] sm:$0xff]
    %v929 = vld [vmem:[#allocation12 + $0x88] sm:$0xff]
    %v930 = vld [vmem:[#allocation12 + $0x90] sm:$0xff]
    %v931 = vld [vmem:[#allocation12 + $0x98] sm:$0xff]
    %v932 = vld [vmem:[#allocation12 + $0xa0] sm:$0xff]
    %v933 = vld [vmem:[#allocation12 + $0xa8] sm:$0xff]
    %v934 = vld [vmem:[#allocation12 + $0xb0] sm:$0xff]
    %v935 = vld [vmem:[#allocation12 + $0xb8] sm:$0xff]
    %v936 = vld [vmem:[#allocation12 + $0xc0] sm:$0xff]
    %v937 = vld [vmem:[#allocation12 + $0xc8] sm:$0xff]
    %v938 = vld [vmem:[#allocation12 + $0xd0] sm:$0xff]
    %v939 = vld [vmem:[#allocation12 + $0xd8] sm:$0xff]
    %v940 = vld [vmem:[#allocation12 + $0xe0] sm:$0xff]
    %v941 = vld [vmem:[#allocation12 + $0xe8] sm:$0xff]
    %v942 = vld [vmem:[#allocation12 + $0xf0] sm:$0xff]
    %v943 = vld [vmem:[#allocation12 + $0xf8] sm:$0xff]
    %v944 = vld [vmem:[#allocation11] sm:$0xff]
    %v945 = vld [vmem:[#allocation11 + $0x8] sm:$0xff]
    %v946 = vld [vmem:[#allocation11 + $0x10] sm:$0xff]
    %v947 = vld [vmem:[#allocation11 + $0x18] sm:$0xff]
    %v948 = vld [vmem:[#allocation11 + $0x20] sm:$0xff]
    %v949 = vld [vmem:[#allocation11 + $0x28] sm:$0xff]
    %v950 = vld [vmem:[#allocation11 + $0x30] sm:$0xff]
    %v951 = vld [vmem:[#allocation11 + $0x38] sm:$0xff]
    %v952 = vld [vmem:[#allocation11 + $0x40] sm:$0xff]
    %v953 = vld [vmem:[#allocation11 + $0x48] sm:$0xff]
    %v954 = vld [vmem:[#allocation11 + $0x50] sm:$0xff]
    %v955 = vld [vmem:[#allocation11 + $0x58] sm:$0xff]
    %v956 = vld [vmem:[#allocation11 + $0x60] sm:$0xff]
    %v957 = vld [vmem:[#allocation11 + $0x68] sm:$0xff]
    %v958 = vld [vmem:[#allocation11 + $0x70] sm:$0xff]
    %v959 = vld [vmem:[#allocation11 + $0x78] sm:$0xff]
    %v960 = vld [vmem:[#allocation11 + $0x80] sm:$0xff]
    %v961 = vld [vmem:[#allocation11 + $0x88] sm:$0xff]
    %v962 = vld [vmem:[#allocation11 + $0x90] sm:$0xff]
    %v963 = vld [vmem:[#allocation11 + $0x98] sm:$0xff]
    %v964 = vld [vmem:[#allocation11 + $0xa0] sm:$0xff]
    %v965 = vld [vmem:[#allocation11 + $0xa8] sm:$0xff]
    %v966 = vld [vmem:[#allocation11 + $0xb0] sm:$0xff]
    %v967 = vld [vmem:[#allocation11 + $0xb8] sm:$0xff]
    %v968 = vld [vmem:[#allocation11 + $0xc0] sm:$0xff]
    %v969 = vld [vmem:[#allocation11 + $0xc8] sm:$0xff]
    %v970 = vld [vmem:[#allocation11 + $0xd0] sm:$0xff]
    %v971 = vld [vmem:[#allocation11 + $0xd8] sm:$0xff]
    %v972 = vld [vmem:[#allocation11 + $0xe0] sm:$0xff]
    %v973 = vld [vmem:[#allocation11 + $0xe8] sm:$0xff]
    %v974 = vld [vmem:[#allocation11 + $0xf0] sm:$0xff]
    %v975 = vld [vmem:[#allocation11 + $0xf8] sm:$0xff]
    %976 = vmatprep.subr.mxu0 0.0
    %977 = vmatpush1.msra.mxu0 %v944
    %978 = vmatprep.subr.mxu0 0.0
    %979 = vmatpush1.msra.mxu0 %v945
    %980 = vmatprep.subr.mxu0 0.0
    %981 = vmatpush1.msra.mxu0 %v946
    %982 = vmatprep.subr.mxu0 0.0
    %983 = vmatpush1.msra.mxu0 %v947
    %984 = vmatprep.subr.mxu0 0.0
    %985 = vmatpush1.msra.mxu0 %v948
    %986 = vmatprep.subr.mxu0 0.0
    %987 = vmatpush1.msra.mxu0 %v949
    %988 = vmatprep.subr.mxu0 0.0
    %989 = vmatpush1.msra.mxu0 %v950
    %990 = vmatprep.subr.mxu0 0.0
    %991 = vmatpush1.msra.mxu0 %v951
    %992 = vmatprep.subr.mxu0 0.0
    %993 = vmatpush1.msra.mxu0 %v952
    %994 = vmatprep.subr.mxu0 0.0
    %995 = vmatpush1.msra.mxu0 %v953
    %996 = vmatprep.subr.mxu0 0.0
    %997 = vmatpush1.msra.mxu0 %v954
    %998 = vmatprep.subr.mxu0 0.0
    %999 = vmatpush1.msra.mxu0 %v955
    %1000 = vmatprep.subr.mxu0 0.0
    %1001 = vmatpush1.msra.mxu0 %v956
    %1002 = vmatprep.subr.mxu0 0.0
    %1003 = vmatpush1.msra.mxu0 %v957
    %1004 = vmatprep.subr.mxu0 0.0
    %1005 = vmatpush1.msra.mxu0 %v958
    %1006 = vmatprep.subr.mxu0 0.0
    %1007 = vmatpush1.msra.mxu0 %v959
    %1008 = vmatprep.subr.mxu0 0.0
    %1009 = vmatpush1.msra.mxu0 %v960
    %1010 = vmatprep.subr.mxu0 0.0
    %1011 = vmatpush1.msra.mxu0 %v961
    %1012 = vmatprep.subr.mxu0 0.0
    %1013 = vmatpush1.msra.mxu0 %v962
    %1014 = vmatprep.subr.mxu0 0.0
    %1015 = vmatpush1.msra.mxu0 %v963
    %1016 = vmatprep.subr.mxu0 0.0
    %1017 = vmatpush1.msra.mxu0 %v964
    %1018 = vmatprep.subr.mxu0 0.0
    %1019 = vmatpush1.msra.mxu0 %v965
    %1020 = vmatprep.subr.mxu0 0.0
    %1021 = vmatpush1.msra.mxu0 %v966
    %1022 = vmatprep.subr.mxu0 0.0
    %1023 = vmatpush1.msra.mxu0 %v967
    %1024 = vmatprep.subr.mxu0 0.0
    %1025 = vmatpush1.msra.mxu0 %v968
    %1026 = vmatprep.subr.mxu0 0.0
    %1027 = vmatpush1.msra.mxu0 %v969
    %1028 = vmatprep.subr.mxu0 0.0
    %1029 = vmatpush1.msra.mxu0 %v970
    %1030 = vmatprep.subr.mxu0 0.0
    %1031 = vmatpush1.msra.mxu0 %v971
    %1032 = vmatprep.subr.mxu0 0.0
    %1033 = vmatpush1.msra.mxu0 %v972
    %1034 = vmatprep.subr.mxu0 0.0
    %1035 = vmatpush1.msra.mxu0 %v973
    %1036 = vmatprep.subr.mxu0 0.0
    %1037 = vmatpush1.msra.mxu0 %v974
    %1038 = vmatprep.subr.mxu0 0.0
    %1039 = vmatpush1.msra.mxu0 %v975
    %1040 = vmatprep.mubr.f32.mxu0 %v911
    %1041 = vmatmul.mubr.f32.gmra.mrb[0].mxu0 %v910
    %v1042 = vpop.f32.mrb[0].mxu0
    %v1043 = vadd.f32 0.0, %v1042
    %v1044 = vpop.f32.mrb[0].mxu0
    %1045 = vdwg.mxu0
    %1046 = vmatprep.subr.mxu0 0.0
    %1047 = vmatpush1.msra.mxu0 %v912
    %1048 = vmatprep.subr.mxu0 0.0
    %1049 = vmatpush1.msra.mxu0 %v913
    %1050 = vmatprep.subr.mxu0 0.0
    %1051 = vmatpush1.msra.mxu0 %v914
    %1052 = vmatprep.subr.mxu0 0.0
    %1053 = vmatpush1.msra.mxu0 %v915
    %1054 = vmatprep.subr.mxu0 0.0
    %1055 = vmatpush1.msra.mxu0 %v916
    %1056 = vmatprep.subr.mxu0 0.0
    %1057 = vmatpush1.msra.mxu0 %v917
    %1058 = vmatprep.subr.mxu0 0.0
    %1059 = vmatpush1.msra.mxu0 %v918
    %1060 = vmatprep.subr.mxu0 0.0
    %1061 = vmatpush1.msra.mxu0 %v919
    %1062 = vmatprep.subr.mxu0 0.0
    %1063 = vmatpush1.msra.mxu0 %v920
    %1064 = vmatprep.subr.mxu0 0.0
    %1065 = vmatpush1.msra.mxu0 %v921
    %1066 = vmatprep.subr.mxu0 0.0
    %1067 = vmatpush1.msra.mxu0 %v922
    %1068 = vmatprep.subr.mxu0 0.0
    %1069 = vmatpush1.msra.mxu0 %v923
    %1070 = vmatprep.subr.mxu0 0.0
    %1071 = vmatpush1.msra.mxu0 %v924
    %1072 = vmatprep.subr.mxu0 0.0
    %1073 = vmatpush1.msra.mxu0 %v925
    %1074 = vmatprep.subr.mxu0 0.0
    %1075 = vmatpush1.msra.mxu0 %v926
    %1076 = vmatprep.subr.mxu0 0.0
    %1077 = vmatpush1.msra.mxu0 %v927
    %1078 = vmatprep.subr.mxu0 0.0
    %1079 = vmatpush1.msra.mxu0 %v928
    %1080 = vmatprep.subr.mxu0 0.0
    %1081 = vmatpush1.msra.mxu0 %v929
    %1082 = vmatprep.subr.mxu0 0.0
    %1083 = vmatpush1.msra.mxu0 %v930
    %1084 = vmatprep.subr.mxu0 0.0
    %1085 = vmatpush1.msra.mxu0 %v931
    %1086 = vmatprep.subr.mxu0 0.0
    %1087 = vmatpush1.msra.mxu0 %v932
    %1088 = vmatprep.subr.mxu0 0.0
    %1089 = vmatpush1.msra.mxu0 %v933
    %1090 = vmatprep.subr.mxu0 0.0
    %1091 = vmatpush1.msra.mxu0 %v934
    %1092 = vmatprep.subr.mxu0 0.0
    %1093 = vmatpush1.msra.mxu0 %v935
    %1094 = vmatprep.subr.mxu0 0.0
    %1095 = vmatpush1.msra.mxu0 %v936
    %1096 = vmatprep.subr.mxu0 0.0
    %1097 = vmatpush1.msra.mxu0 %v937
    %1098 = vmatprep.subr.mxu0 0.0
    %1099 = vmatpush1.msra.mxu0 %v938
    %1100 = vmatprep.subr.mxu0 0.0
    %1101 = vmatpush1.msra.mxu0 %v939
    %1102 = vmatprep.subr.mxu0 0.0
    %1103 = vmatpush1.msra.mxu0 %v940
    %1104 = vmatprep.subr.mxu0 0.0
    %1105 = vmatpush1.msra.mxu0 %v941
    %1106 = vmatprep.subr.mxu0 0.0
    %1107 = vmatpush1.msra.mxu0 %v942
    %1108 = vmatprep.subr.mxu0 0.0
    %1109 = vmatpush1.msra.mxu0 %v943
    %1110 = vmatprep.mubr.f32.mxu0 %v724
    %1111 = vmatmul.mubr.f32.gmra.mrb[0].mxu0 %v723
    %v1112 = vpop.f32.mrb[0].mxu0
    %v1113 = vadd.f32 %v1043, %v1112
    %v1114 = vpop.f32.mrb[0].mxu0
    %1115 = vdwg.mxu0
    %s1116 = sld [smem:[#allocation2]]
    %v1117 = vstv %s1116
    %v1118 = vadd.f32 %v1113, %v1117
    %1119 = vst [vmem:[#allocation14] sm:$0xff] %v1118
    // Predicated region
    $region70: #{tpu_custom_call.1} parent=1 // pred_check
      _
    $region71: #{tpu_custom_call.1} parent=1 // pred_check_branch
      %1121 = sbr.rel (0) target = $region73
    $region72: #{tpu_custom_call.1} parent=1 // pred_region
      %s1123 = ssub.s32 128, 128
      %1124 = vsyncadd [#allocation5], %s1123
      %s1126 = sshll.u32 [#allocation14], 4
      %s1127 = int_to_ptr.vmem [resolvable:$true] %s1126
      %1129 = dma.vmem_to_hbm [thread:$0]  %s1127, 128, %s11, [#allocation5]
    $region73: #{tpu_custom_call.1} parent=1 // pred_fallthru
      _
    // Predicated region
    $region74: #{tpu_custom_call.1} parent=1 // pred_check
      _
    $region75: #{tpu_custom_call.1} parent=1 // pred_check_branch
      %1131 = sbr.rel (0) target = $region77
    $region76: #{tpu_custom_call.1} parent=1 // pred_region
      %1132 = dma.done [#allocation5], 128
    $region77: #{tpu_custom_call.1} parent=1 // pred_fallthru
      _
    %1133 = vsyncpa [#allocation4], 1
    %1134 = vsyncpa [#allocation7], 1
    %1135 = vsyncpa [#allocation10], 1
    %1136 = vsyncpa [#allocation13], 1
    %1137 = vsyncpa [#allocation5], 1

</llo_original>
